<compile_context>
chip_gen: v7x
topology: tpu7x:2x2x1
jax: 0.10.0
libtpu: 0.0.40
codegen_flags: <defaults>
</compile_context>

<pallas_src>
import jax
import jax.numpy as jnp
from jax import lax
from jax.experimental import pallas as pl
from jax.experimental.pallas import tpu as pltpu
import numpy as np

TAU = 1.0
GROUP = 8          # problems packed per grid step: 128 lanes // N(=16) lanes per problem


def dag_kernel(score_ref, uperm_ref, edge_ref, ue0_ref, ue1_ref, out_ref):
    g_count, n = uperm_ref.shape                     # (GROUP, N)

    # ---- permutation logits: score + Gumbel noise, per packed problem ------
    gp = -jnp.log(-jnp.log(uperm_ref[...]))          # (G, N)
    s = score_ref[...] + gp                          # (1,N)+(G,N) -> (G, N)

    # ---- SoftSort (soft / training mode) ------------------------------------
    # s_row[g,i,j] = s[g,j] (varies along lanes); s_col = minor-dims transpose
    # (varies along sublanes).  b[g,0,j] = sum_k |s[g,k] - s[g,j]|.
    s_row = lax.broadcast_in_dim(s, (g_count, n, n), (0, 2))     # (G, N, N)
    s_col = jnp.swapaxes(s_row, 1, 2)                            # (G, N, N) via XLU
    b = jnp.sum(jnp.abs(s_col - s_row), axis=1, keepdims=True)   # (G, 1, N)

    i_idx = lax.broadcasted_iota(jnp.int32, (n, n), 0).astype(jnp.float32)
    coeff = (n - 1.0) - 2.0 * i_idx                              # (N, N): n-1-2i per row
    pmax = (s_row * coeff - b) * (1.0 / TAU)                     # (G, N, N)
    pmax = pmax - jnp.max(pmax, axis=-1, keepdims=True)
    e = jnp.exp(pmax)
    pi = e * pl.reciprocal(jnp.sum(e, axis=-1, keepdims=True))   # row softmax, exact

    # ---- permuted_mask = pi @ triu(1) @ pi.T, batched over packed problems --
    row_i = lax.broadcasted_iota(jnp.int32, (n, n), 0)
    col_j = lax.broadcasted_iota(jnp.int32, (n, n), 1)
    mask = (col_j > row_i).astype(jnp.float32)                   # strict upper-tri
    mask3 = jnp.broadcast_to(mask, (g_count, n, n))
    pm = jnp.einsum('gij,gjk->gik', pi, mask3,
                    preferred_element_type=jnp.float32)
    permuted_mask = jnp.einsum('gik,glk->gil', pm, pi,
                               preferred_element_type=jnp.float32)

    # pack (G,N,N) -> lane-dense (N, G*N): problem g occupies lanes [g*N, (g+1)*N)
    pm_packed = jnp.concatenate(
        [permuted_mask[g] for g in range(g_count)], axis=1)      # (N, G*N)

    # ---- edge sampling, computed directly in the packed (N, G*N) layout -----
    # softmax([E, -E] + g, axis=-1)[..., 1] == sigmoid(((g1 - g0) - 2E) / tau)
    g0 = -jnp.log(-jnp.log(ue0_ref[0]))                          # (N, G*N)
    g1 = -jnp.log(-jnp.log(ue1_ref[0]))                          # (N, G*N)
    r = jax.nn.sigmoid((g1 - g0 - 2.0 * edge_ref[...]) * (1.0 / TAU))

    out_ref[0] = r * pm_packed                                   # single dense store


def _pack_lanes(x, group):
    # (B, N, N) -> (B//group, N, group*N); problem g of chunk c -> lanes [g*N,(g+1)*N)
    bsz, n, _ = x.shape
    return x.reshape(bsz // group, group, n, n).transpose(0, 2, 1, 3).reshape(
        bsz // group, n, group * n)


def _unpack_lanes(x, group):
    # inverse of _pack_lanes: (C, N, group*N) -> (C*group, N, N)
    c, n, _ = x.shape
    return x.reshape(c, n, group, n).transpose(0, 2, 1, 3).reshape(c * group, n, n)


def differentiable_dag_forward(perm_score, edge_score, u_perm, u_e0, u_e1):
    """Batched DifferentiableDAG.forward (training mode, soft sampling).

    perm_score: (N,), edge_score: (N, N) — shared module parameters.
    u_perm: (B, N), u_e0/u_e1: (B, N, N) — per-sample uniform noise.
    Returns (B, N, N): B independent soft DAG adjacency samples.
    """
    n = perm_score.shape[0]
    batch = u_perm.shape[0]
    group = GROUP

    # pad the batch up to a multiple of the packing group
    pad = (-batch) % group
    if pad:
        u_perm = jnp.concatenate([u_perm, jnp.full((pad, n), 0.5, u_perm.dtype)], 0)
        u_e0 = jnp.concatenate([u_e0, jnp.full((pad, n, n), 0.5, u_e0.dtype)], 0)
        u_e1 = jnp.concatenate([u_e1, jnp.full((pad, n, n), 0.5, u_e1.dtype)], 0)
    chunks = (batch + pad) // group

    score_row = perm_score.reshape(1, n).astype(jnp.float32)
    edge_tiled = jnp.tile(edge_score.astype(jnp.float32), (1, group))    # (N, G*N)
    uperm = u_perm.astype(jnp.float32)                                   # (Bp, N)
    ue0_packed = _pack_lanes(u_e0.astype(jnp.float32), group)            # (C, N, G*N)
    ue1_packed = _pack_lanes(u_e1.astype(jnp.float32), group)            # (C, N, G*N)

    grid_spec = pltpu.PrefetchScalarGridSpec(
        num_scalar_prefetch=0,
        grid=(chunks,),
        in_specs=[
            pl.BlockSpec((1, n), lambda c: (0, 0)),                    # perm score
            pl.BlockSpec((group, n), lambda c: (c, 0)),                # perm noise
            pl.BlockSpec((n, group * n), lambda c: (0, 0)),            # tiled edge score
            pl.BlockSpec((1, n, group * n), lambda c: (c, 0, 0)),      # edge noise 0
            pl.BlockSpec((1, n, group * n), lambda c: (c, 0, 0)),      # edge noise 1
        ],
        out_specs=pl.BlockSpec((1, n, group * n), lambda c: (c, 0, 0)),
    )
    out_packed = pl.pallas_call(
        dag_kernel,
        out_shape=jax.ShapeDtypeStruct((chunks, n, group * n), jnp.float32),
        grid_spec=grid_spec,
        compiler_params=pltpu.CompilerParams(dimension_semantics=("parallel",)),
    )(score_row, uperm, edge_tiled, ue0_packed, ue1_packed)

    out = _unpack_lanes(out_packed, group)      # layout plumbing only (outside kernel)
    return out[:batch]


def ref_forward(perm_score, edge_score, u_perm, u_e0, u_e1):
    """Pure-JAX reference mirroring one PyTorch forward (training mode)."""
    n = perm_score.shape[0]
    s = perm_score + (-jnp.log(-jnp.log(u_perm)))
    a = jnp.abs(s[:, None] - s[None, :])
    b = jnp.sum(a, axis=1, keepdims=True)
    sc = (n - 1 - 2 * jnp.arange(n)).astype(jnp.float32)
    c = s[:, None] * sc[None, :]
    pi = jax.nn.softmax((c - b).T / TAU, axis=-1)
    mask = jnp.triu(jnp.ones((n, n), jnp.float32), 1)
    permuted_mask = pi @ mask @ pi.T
    p = jnp.stack([edge_score, -edge_score], axis=2)
    g = -jnp.log(-jnp.log(jnp.stack([u_e0, u_e1], axis=2)))
    r = jax.nn.softmax((p + g) / TAU, axis=2)[:, :, 1]
    return r * permuted_mask


if __name__ == "__main__":
    N = 16    # num_features
    B = 64    # batch of independent forward() samples

    key = jax.random.PRNGKey(0)
    k_perm, k_edge, k_uperm, k_ue0, k_ue1 = jax.random.split(key, 5)

    # Deterministic parameter init (mirrors torch.randn shapes in __init__).
    permutation_score = jax.random.normal(k_perm, (N,), jnp.float32)
    edge_score = jax.random.normal(k_edge, (N, N), jnp.float32)

    # Uniform noise for the Gumbel perturbations (stands in for torch.rand_like).
    u_perm = jax.random.uniform(k_uperm, (B, N), jnp.float32, minval=1e-6, maxval=1.0)
    u_e0 = jax.random.uniform(k_ue0, (B, N, N), jnp.float32, minval=1e-6, maxval=1.0)
    u_e1 = jax.random.uniform(k_ue1, (B, N, N), jnp.float32, minval=1e-6, maxval=1.0)

    out = differentiable_dag_forward(permutation_score, edge_score, u_perm, u_e0, u_e1)
    out = jax.block_until_ready(out)

    ref = jax.vmap(ref_forward, in_axes=(None, None, 0, 0, 0))(
        permutation_score, edge_score, u_perm, u_e0, u_e1)
    np.testing.assert_allclose(np.asarray(out), np.asarray(ref), rtol=1e-5, atol=1e-5)

    print("KERNEL_OK")
</pallas_src>

<mosaic_0001>
module attributes {stable_mosaic.version = 11 : i64} {
  func.func @dag_kernel(%arg0: i32, %arg1: memref<1x16xf32, #tpu.memory_space<vmem>>, %arg2: memref<8x16xf32, #tpu.memory_space<vmem>>, %arg3: memref<16x128xf32, #tpu.memory_space<vmem>>, %arg4: memref<1x16x128xf32, #tpu.memory_space<vmem>>, %arg5: memref<1x16x128xf32, #tpu.memory_space<vmem>>, %arg6: memref<1x16x128xf32, #tpu.memory_space<vmem>>) attributes {dimension_semantics = [#tpu.dimension_semantics<parallel>], iteration_bounds = array<i64: 8>, scalar_prefetch = 0 : i64, scratch_operands = 0 : i64, tpu.core_type = #tpu.core_type<tc>, window_params = [{pipeline_mode = #tpu.pipeline_mode<synchronous>, transform_indices = @transform_0, window_bounds = array<i64: 1, 16>}, {transform_indices = @transform_1, window_bounds = array<i64: 8, 16>}, {pipeline_mode = #tpu.pipeline_mode<synchronous>, transform_indices = @transform_2, window_bounds = array<i64: 16, 128>}, {transform_indices = @transform_3, window_bounds = array<i64: 1, 16, 128>}, {transform_indices = @transform_4, window_bounds = array<i64: 1, 16, 128>}, {transform_indices = @transform_5, window_bounds = array<i64: 1, 16, 128>}]} {
    %c0 = arith.constant 0 : index
    %c0_0 = arith.constant 0 : index
    %0 = vector.load %arg2[%c0, %c0_0] : memref<8x16xf32, #tpu.memory_space<vmem>>, vector<8x16xf32>
    %1 = math.log %0 : vector<8x16xf32>
    %cst = arith.constant 0.000000e+00 : f32
    %2 = vector.broadcast %cst : f32 to vector<8x16xf32>
    %3 = arith.subf %2, %1 : vector<8x16xf32>
    %4 = math.log %3 : vector<8x16xf32>
    %cst_1 = arith.constant 0.000000e+00 : f32
    %5 = vector.broadcast %cst_1 : f32 to vector<8x16xf32>
    %6 = arith.subf %5, %4 : vector<8x16xf32>
    %c0_2 = arith.constant 0 : index
    %c0_3 = arith.constant 0 : index
    %7 = vector.load %arg1[%c0_2, %c0_3] : memref<1x16xf32, #tpu.memory_space<vmem>>, vector<1x16xf32>
    %8 = vector.broadcast %7 : vector<1x16xf32> to vector<8x16xf32>
    %9 = arith.addf %8, %6 : vector<8x16xf32>
    %10 = vector.shape_cast %9 : vector<8x16xf32> to vector<8x1x16xf32>
    %11 = vector.broadcast %10 : vector<8x1x16xf32> to vector<8x16x16xf32>
    %12 = tpu.transpose %11, [0, 2, 1] : vector<8x16x16xf32> -> vector<8x16x16xf32>
    %13 = arith.subf %12, %11 : vector<8x16x16xf32>
    %14 = math.absf %13 : vector<8x16x16xf32>
    %cst_4 = arith.constant dense<0.000000e+00> : vector<8x16xf32>
    %15 = vector.multi_reduction <add>, %14, %cst_4 [1] : vector<8x16x16xf32> to vector<8x16xf32>
    %16 = vector.shape_cast %15 : vector<8x16xf32> to vector<8x1x16xf32>
    %17 = tpu.iota {dimensions = array<i32: 0>} : vector<16x16xi32>
    %18 = arith.sitofp %17 : vector<16x16xi32> to vector<16x16xf32>
    %cst_5 = arith.constant 2.000000e+00 : f32
    %19 = vector.broadcast %cst_5 : f32 to vector<16x16xf32>
    %20 = arith.mulf %19, %18 : vector<16x16xf32>
    %cst_6 = arith.constant 1.500000e+01 : f32
    %21 = vector.broadcast %cst_6 : f32 to vector<16x16xf32>
    %22 = arith.subf %21, %20 : vector<16x16xf32>
    %23 = vector.shape_cast %22 : vector<16x16xf32> to vector<1x16x16xf32>
    %24 = vector.broadcast %23 : vector<1x16x16xf32> to vector<8x16x16xf32>
    %25 = arith.mulf %11, %24 : vector<8x16x16xf32>
    %26 = vector.broadcast %16 : vector<8x1x16xf32> to vector<8x16x16xf32>
    %27 = arith.subf %25, %26 : vector<8x16x16xf32>
    %cst_7 = arith.constant 1.000000e+00 : f32
    %28 = vector.broadcast %cst_7 : f32 to vector<8x16x16xf32>
    %29 = arith.mulf %27, %28 : vector<8x16x16xf32>
    %cst_8 = arith.constant dense<0xFF800000> : vector<8x16xf32>
    %30 = vector.multi_reduction <maximumf>, %29, %cst_8 [2] : vector<8x16x16xf32> to vector<8x16xf32>
    %31 = vector.shape_cast %30 : vector<8x16xf32> to vector<8x16x1xf32>
    %32 = vector.broadcast %31 : vector<8x16x1xf32> to vector<8x16x16xf32>
    %33 = arith.subf %29, %32 : vector<8x16x16xf32>
    %34 = math.exp %33 : vector<8x16x16xf32>
    %cst_9 = arith.constant dense<0.000000e+00> : vector<8x16xf32>
    %35 = vector.multi_reduction <add>, %34, %cst_9 [2] : vector<8x16x16xf32> to vector<8x16xf32>
    %36 = vector.shape_cast %35 : vector<8x16xf32> to vector<8x16x1xf32>
    %37 = tpu.reciprocal %36 : vector<8x16x1xf32> -> vector<8x16x1xf32>
    %38 = vector.broadcast %37 : vector<8x16x1xf32> to vector<8x16x16xf32>
    %39 = arith.mulf %34, %38 : vector<8x16x16xf32>
    %40 = tpu.iota {dimensions = array<i32: 0>} : vector<16x16xi32>
    %41 = tpu.iota {dimensions = array<i32: 1>} : vector<16x16xi32>
    %42 = arith.cmpi sgt, %41, %40 : vector<16x16xi32>
    %43 = arith.extui %42 : vector<16x16xi1> to vector<16x16xi32>
    %44 = arith.sitofp %43 : vector<16x16xi32> to vector<16x16xf32>
    %45 = vector.shape_cast %44 : vector<16x16xf32> to vector<1x16x16xf32>
    %46 = vector.broadcast %45 : vector<1x16x16xf32> to vector<8x16x16xf32>
    "tpu.trace_start"() <{level = 10 : i32, message = "gij,gjk->gik"}> : () -> ()
    %cst_10 = arith.constant dense<0.000000e+00> : vector<8x16x16xf32>
    %47 = tpu.matmul %39, %46, %cst_10 {dimension_numbers = #tpu.dot_dimension_numbers<[2], [1], [1], [2], [0, 0, 0, 1, 1, 2], [0], [0]>} : vector<8x16x16xf32>, vector<8x16x16xf32>, vector<8x16x16xf32> -> vector<8x16x16xf32>
    "tpu.trace_stop"() : () -> ()
    "tpu.trace_start"() <{level = 10 : i32, message = "gik,glk->gil"}> : () -> ()
    %cst_11 = arith.constant dense<0.000000e+00> : vector<8x16x16xf32>
    %48 = tpu.matmul %47, %39, %cst_11 {dimension_numbers = #tpu.dot_dimension_numbers<[2], [2], [1], [1], [0, 0, 0, 1, 1, 1], [0], [0]>} : vector<8x16x16xf32>, vector<8x16x16xf32>, vector<8x16x16xf32> -> vector<8x16x16xf32>
    "tpu.trace_stop"() : () -> ()
    %49 = vector.extract_strided_slice %48 {offsets = [0, 0, 0], sizes = [1, 16, 16], strides = [1, 1, 1]} : vector<8x16x16xf32> to vector<1x16x16xf32>
    %50 = vector.shape_cast %49 : vector<1x16x16xf32> to vector<16x16xf32>
    %51 = vector.extract_strided_slice %48 {offsets = [1, 0, 0], sizes = [1, 16, 16], strides = [1, 1, 1]} : vector<8x16x16xf32> to vector<1x16x16xf32>
    %52 = vector.shape_cast %51 : vector<1x16x16xf32> to vector<16x16xf32>
    %53 = vector.extract_strided_slice %48 {offsets = [2, 0, 0], sizes = [1, 16, 16], strides = [1, 1, 1]} : vector<8x16x16xf32> to vector<1x16x16xf32>
    %54 = vector.shape_cast %53 : vector<1x16x16xf32> to vector<16x16xf32>
    %55 = vector.extract_strided_slice %48 {offsets = [3, 0, 0], sizes = [1, 16, 16], strides = [1, 1, 1]} : vector<8x16x16xf32> to vector<1x16x16xf32>
    %56 = vector.shape_cast %55 : vector<1x16x16xf32> to vector<16x16xf32>
    %57 = vector.extract_strided_slice %48 {offsets = [4, 0, 0], sizes = [1, 16, 16], strides = [1, 1, 1]} : vector<8x16x16xf32> to vector<1x16x16xf32>
    %58 = vector.shape_cast %57 : vector<1x16x16xf32> to vector<16x16xf32>
    %59 = vector.extract_strided_slice %48 {offsets = [5, 0, 0], sizes = [1, 16, 16], strides = [1, 1, 1]} : vector<8x16x16xf32> to vector<1x16x16xf32>
    %60 = vector.shape_cast %59 : vector<1x16x16xf32> to vector<16x16xf32>
    %61 = vector.extract_strided_slice %48 {offsets = [6, 0, 0], sizes = [1, 16, 16], strides = [1, 1, 1]} : vector<8x16x16xf32> to vector<1x16x16xf32>
    %62 = vector.shape_cast %61 : vector<1x16x16xf32> to vector<16x16xf32>
    %63 = vector.extract_strided_slice %48 {offsets = [7, 0, 0], sizes = [1, 16, 16], strides = [1, 1, 1]} : vector<8x16x16xf32> to vector<1x16x16xf32>
    %64 = vector.shape_cast %63 : vector<1x16x16xf32> to vector<16x16xf32>
    %65 = tpu.concatenate %50, %52, %54, %56, %58, %60, %62, %64 in 1 : vector<16x16xf32>, vector<16x16xf32>, vector<16x16xf32>, vector<16x16xf32>, vector<16x16xf32>, vector<16x16xf32>, vector<16x16xf32>, vector<16x16xf32> -> vector<16x128xf32>
    %c0_12 = arith.constant 0 : index
    %c0_13 = arith.constant 0 : index
    %c0_14 = arith.constant 0 : index
    %66 = vector.load %arg4[%c0_12, %c0_13, %c0_14] : memref<1x16x128xf32, #tpu.memory_space<vmem>>, vector<1x16x128xf32>
    %67 = vector.shape_cast %66 : vector<1x16x128xf32> to vector<16x128xf32>
    %68 = math.log %67 : vector<16x128xf32>
    %cst_15 = arith.constant 0.000000e+00 : f32
    %69 = vector.broadcast %cst_15 : f32 to vector<16x128xf32>
    %70 = arith.subf %69, %68 : vector<16x128xf32>
    %71 = math.log %70 : vector<16x128xf32>
    %cst_16 = arith.constant 0.000000e+00 : f32
    %72 = vector.broadcast %cst_16 : f32 to vector<16x128xf32>
    %73 = arith.subf %72, %71 : vector<16x128xf32>
    %c0_17 = arith.constant 0 : index
    %c0_18 = arith.constant 0 : index
    %c0_19 = arith.constant 0 : index
    %74 = vector.load %arg5[%c0_17, %c0_18, %c0_19] : memref<1x16x128xf32, #tpu.memory_space<vmem>>, vector<1x16x128xf32>
    %75 = vector.shape_cast %74 : vector<1x16x128xf32> to vector<16x128xf32>
    %76 = math.log %75 : vector<16x128xf32>
    %cst_20 = arith.constant 0.000000e+00 : f32
    %77 = vector.broadcast %cst_20 : f32 to vector<16x128xf32>
    %78 = arith.subf %77, %76 : vector<16x128xf32>
    %79 = math.log %78 : vector<16x128xf32>
    %cst_21 = arith.constant 0.000000e+00 : f32
    %80 = vector.broadcast %cst_21 : f32 to vector<16x128xf32>
    %81 = arith.subf %80, %79 : vector<16x128xf32>
    %82 = arith.subf %81, %73 : vector<16x128xf32>
    %c0_22 = arith.constant 0 : index
    %c0_23 = arith.constant 0 : index
    %83 = vector.load %arg3[%c0_22, %c0_23] : memref<16x128xf32, #tpu.memory_space<vmem>>, vector<16x128xf32>
    %cst_24 = arith.constant 2.000000e+00 : f32
    %84 = vector.broadcast %cst_24 : f32 to vector<16x128xf32>
    %85 = arith.mulf %84, %83 : vector<16x128xf32>
    %86 = arith.subf %82, %85 : vector<16x128xf32>
    %cst_25 = arith.constant 1.000000e+00 : f32
    %87 = vector.broadcast %cst_25 : f32 to vector<16x128xf32>
    %88 = arith.mulf %86, %87 : vector<16x128xf32>
    %89 = arith.negf %88 : vector<16x128xf32>
    %90 = math.exp %89 : vector<16x128xf32>
    %cst_26 = arith.constant 1.000000e+00 : f32
    %91 = vector.broadcast %cst_26 : f32 to vector<16x128xf32>
    %92 = arith.addf %91, %90 : vector<16x128xf32>
    %93 = arith.divf %91, %92 : vector<16x128xf32>
    %94 = arith.mulf %93, %65 : vector<16x128xf32>
    %c0_27 = arith.constant 0 : index
    %c0_28 = arith.constant 0 : index
    %c0_29 = arith.constant 0 : index
    %95 = vector.load %arg6[%c0_27, %c0_28, %c0_29] : memref<1x16x128xf32, #tpu.memory_space<vmem>>, vector<1x16x128xf32>
    %96 = vector.shape_cast %95 : vector<1x16x128xf32> to vector<16x128xf32>
    %97 = vector.shape_cast %94 : vector<16x128xf32> to vector<1x16x128xf32>
    tpu.vector_store %arg6[%c0_27, %c0_28, %c0_29], %97 {strides = array<i32>} : memref<1x16x128xf32, #tpu.memory_space<vmem>>, vector<1x16x128xf32>,
    return
  }
  func.func @transform_0(%arg0: i32) -> (i32, i32) {
    %c0_i32 = arith.constant 0 : i32
    %c0_i32_0 = arith.constant 0 : i32
    %c0_i32_1 = arith.constant 0 : i32
    return %c0_i32, %c0_i32_0 : i32, i32
  }
  func.func @transform_1(%arg0: i32) -> (i32, i32) {
    %c0_i32 = arith.constant 0 : i32
    %c0_i32_0 = arith.constant 0 : i32
    return %arg0, %c0_i32 : i32, i32
  }
  func.func @transform_2(%arg0: i32) -> (i32, i32) {
    %c0_i32 = arith.constant 0 : i32
    %c0_i32_0 = arith.constant 0 : i32
    %c0_i32_1 = arith.constant 0 : i32
    return %c0_i32, %c0_i32_0 : i32, i32
  }
  func.func @transform_3(%arg0: i32) -> (i32, i32, i32) {
    %c0_i32 = arith.constant 0 : i32
    %c0_i32_0 = arith.constant 0 : i32
    %c0_i32_1 = arith.constant 0 : i32
    return %arg0, %c0_i32, %c0_i32_0 : i32, i32, i32
  }
  func.func @transform_4(%arg0: i32) -> (i32, i32, i32) {
    %c0_i32 = arith.constant 0 : i32
    %c0_i32_0 = arith.constant 0 : i32
    %c0_i32_1 = arith.constant 0 : i32
    return %arg0, %c0_i32, %c0_i32_0 : i32, i32, i32
  }
  func.func @transform_5(%arg0: i32) -> (i32, i32, i32) {
    %c0_i32 = arith.constant 0 : i32
    %c0_i32_0 = arith.constant 0 : i32
    %c0_i32_1 = arith.constant 0 : i32
    return %arg0, %c0_i32, %c0_i32_0 : i32, i32, i32
  }
}

</mosaic_0001>

<llo_original>
// kernel: tpu_custom_call.1
$region0: #{tpu_custom_call.1}
  #allocation0 [shape = 'u32[]', space=smem, size = 0x4, offset = 0x4, fixed_abs, tag = 'smem constant byte address 0x4 - core index']
  #allocation1 [shape = 'u32[144,128]{1,0:T(1,128)}', space=vmem, size = 0x12000, scoped, tag = 'internal scratch']
  %s0 = inlined_call_operand.vmem [shape: f32[1,16], index: 0, kind: input, shape index: {}]
  %s1 = inlined_call_operand.vmem [shape: f32[64,16], index: 1, kind: input, shape index: {}]
  %s2 = inlined_call_operand.vmem [shape: f32[16,128], index: 2, kind: input, shape index: {}]
  %s3 = inlined_call_operand.hbm [shape: f32[8,16,128], index: 3, kind: input, shape index: {}]
  %s4 = inlined_call_operand.hbm [shape: f32[8,16,128], index: 4, kind: input, shape index: {}]
  %s5 = inlined_call_operand.hbm [shape: f32[8,16,128], index: 5, kind: output, shape index: {}]
  %s6 = sld [smem:[#allocation0]]
  $region61: #{tpu_custom_call.1} parent=0
    _
  %s8 = ssub.s32 1, %s6
  %s9 = scalar_select 0, %s8, %s6
  $region1: #{tpu_custom_call.1} parent=0
    #allocation2 [shape = 'u8[16384]{0}', space=vmem, size = 0x4000, scoped, tag = 'input window, operand 3']
    #allocation3 [shape = 's32[2]{0}', space=sflag, size = 0x8, scoped, tag = 'scoped memory for tpu_custom_call.1']
    #allocation4 [shape = 's32[2]{0}', space=sflag, size = 0x8, scoped, tag = 'scoped memory for tpu_custom_call.1']
    #allocation5 [shape = 'u8[16384]{0}', space=vmem, size = 0x4000, scoped, tag = 'input window, operand 4']
    #allocation6 [shape = 's32[2]{0}', space=sflag, size = 0x8, scoped, tag = 'scoped memory for tpu_custom_call.1']
    #allocation7 [shape = 'u8[16384]{0}', space=vmem, size = 0x4000, scoped, tag = 'output window, operand 0']
    %10 = vsyncpa [#allocation3], 0
    %s11 = scalar_lea.sflag [#allocation3], 1
    %12 = vsyncpa %s11, 0
    %13 = vsyncpa [#allocation6], 0
    %s14 = scalar_lea.sflag [#allocation6], 1
    %15 = vsyncpa %s14, 0
    %16 = vsyncpa [#allocation4], 0
    %s17 = scalar_lea.sflag [#allocation4], 1
    %18 = vsyncpa %s17, 0
    loop: start=0, step=1, limit=10
    $region2: #{tpu_custom_call.1} parent=1 // loop_pre_header
      _
    $region3: #{tpu_custom_call.1} parent=1 // loop_header
      %s20 = sphi 0, %s24
      %p21 = scmp.ge.s32.totalorder %s20, 10
      %s28 = sphi 0, %s28
      %s30 = sphi 0, %s28
      %s31 = sphi 0, %s30
      %s45 = sphi 0, %s31
      %s51 = sphi 0, %s53
      %s54 = sphi 0, %s51
      %s55 = sphi 0, %s54
      %s71 = sphi 0, %s55
      %s75 = sphi 0, %s75
      %s77 = sphi 0, %s75
      %s78 = sphi 0, %s77
      %s92 = sphi 0, %s78
      %s98 = sphi 0, %s100
      %s101 = sphi 0, %s98
      %s102 = sphi 0, %s101
      %s118 = sphi 0, %s102
      %s124 = sphi 0, %s126
      %s127 = sphi 0, %s124
      %s128 = sphi 0, %s127
      %s144 = sphi 0, %s128
      %s150 = sphi 0, %s152
      %s153 = sphi 0, %s150
      %s154 = sphi 0, %s153
      %s170 = sphi 0, %s154
    $region4: #{tpu_custom_call.1} parent=1 // loop_header_branch
      %23 = sbr.rel (%p21) target = $region8
    $region5: #{tpu_custom_call.1} parent=1 // loop_body
      %s25 = ssub.s32 %s20, 1
      %s26 = ssub.s32 %s20, 2
      %s27 = sadd.s32 %s20, 1
      %s29 = sadd.s32 %s28, 1
      %p32 = scmp.eq.s32.totalorder %s20, 7
      %p33 = scmp.ne.s32.totalorder %s28, %s30
      %p34 = scmp.eq.s32.totalorder %s20, 0
      %p35 = por %p33, %p34
      %p36 = scmp.ne.s32.totalorder %s28, %s30
      %p37 = scmp.eq.s32.totalorder %s25, 7
      %p38 = por %p36, %p37
      %p39 = scmp.ne.s32.totalorder %s30, %s31
      %p40 = scmp.eq.s32.totalorder %s25, 0
      %p41 = por %p39, %p40
      %p42 = scmp.ne.s32.totalorder %s30, %s31
      %p43 = scmp.eq.s32.totalorder %s26, 7
      %p44 = por %p42, %p43
      %p46 = scmp.ne.s32.totalorder %s31, %s45
      %p47 = scmp.eq.s32.totalorder %s26, 0
      %p48 = por %p46, %p47
      %s49 = ssub.s32 %s20, %s27
      %p50 = scmp.eq.s32.totalorder %s49, 0
      %s52 = sadd.s32 %s51, 1
      %s53 = scalar_select %p50, %s51, %s52
      %p56 = pneg %p50
      %p57 = scmp.eq.s32.totalorder %s20, 7
      %p58 = por %p56, %p57
      %p59 = scmp.ne.s32.totalorder %s51, %s54
      %p60 = scmp.eq.s32.totalorder %s20, 0
      %p61 = por %p59, %p60
      %p62 = scmp.ne.s32.totalorder %s51, %s54
      %p63 = scmp.eq.s32.totalorder %s25, 7
      %p64 = por %p62, %p63
      %p65 = scmp.ne.s32.totalorder %s54, %s55
      %p66 = scmp.eq.s32.totalorder %s25, 0
      %p67 = por %p65, %p66
      %p68 = scmp.ne.s32.totalorder %s54, %s55
      %p69 = scmp.eq.s32.totalorder %s26, 7
      %p70 = por %p68, %p69
      %p72 = scmp.ne.s32.totalorder %s55, %s71
      %p73 = scmp.eq.s32.totalorder %s26, 0
      %p74 = por %p72, %p73
      %s76 = sadd.s32 %s75, 1
      %p79 = scmp.eq.s32.totalorder %s20, 7
      %p80 = scmp.ne.s32.totalorder %s75, %s77
      %p81 = scmp.eq.s32.totalorder %s20, 0
      %p82 = por %p80, %p81
      %p83 = scmp.ne.s32.totalorder %s75, %s77
      %p84 = scmp.eq.s32.totalorder %s25, 7
      %p85 = por %p83, %p84
      %p86 = scmp.ne.s32.totalorder %s77, %s78
      %p87 = scmp.eq.s32.totalorder %s25, 0
      %p88 = por %p86, %p87
      %p89 = scmp.ne.s32.totalorder %s77, %s78
      %p90 = scmp.eq.s32.totalorder %s26, 7
      %p91 = por %p89, %p90
      %p93 = scmp.ne.s32.totalorder %s78, %s92
      %p94 = scmp.eq.s32.totalorder %s26, 0
      %p95 = por %p93, %p94
      %s96 = ssub.s32 %s20, %s27
      %p97 = scmp.eq.s32.totalorder %s96, 0
      %s99 = sadd.s32 %s98, 1
      %s100 = scalar_select %p97, %s98, %s99
      %p103 = pneg %p97
      %p104 = scmp.eq.s32.totalorder %s20, 7
      %p105 = por %p103, %p104
      %p106 = scmp.ne.s32.totalorder %s98, %s101
      %p107 = scmp.eq.s32.totalorder %s20, 0
      %p108 = por %p106, %p107
      %p109 = scmp.ne.s32.totalorder %s98, %s101
      %p110 = scmp.eq.s32.totalorder %s25, 7
      %p111 = por %p109, %p110
      %p112 = scmp.ne.s32.totalorder %s101, %s102
      %p113 = scmp.eq.s32.totalorder %s25, 0
      %p114 = por %p112, %p113
      %p115 = scmp.ne.s32.totalorder %s101, %s102
      %p116 = scmp.eq.s32.totalorder %s26, 7
      %p117 = por %p115, %p116
      %p119 = scmp.ne.s32.totalorder %s102, %s118
      %p120 = scmp.eq.s32.totalorder %s26, 0
      %p121 = por %p119, %p120
      %s122 = ssub.s32 %s20, %s27
      %p123 = scmp.eq.s32.totalorder %s122, 0
      %s125 = sadd.s32 %s124, 1
      %s126 = scalar_select %p123, %s124, %s125
      %p129 = pneg %p123
      %p130 = scmp.eq.s32.totalorder %s20, 7
      %p131 = por %p129, %p130
      %p132 = scmp.ne.s32.totalorder %s124, %s127
      %p133 = scmp.eq.s32.totalorder %s20, 0
      %p134 = por %p132, %p133
      %p135 = scmp.ne.s32.totalorder %s124, %s127
      %p136 = scmp.eq.s32.totalorder %s25, 7
      %p137 = por %p135, %p136
      %p138 = scmp.ne.s32.totalorder %s127, %s128
      %p139 = scmp.eq.s32.totalorder %s25, 0
      %p140 = por %p138, %p139
      %p141 = scmp.ne.s32.totalorder %s127, %s128
      %p142 = scmp.eq.s32.totalorder %s26, 7
      %p143 = por %p141, %p142
      %p145 = scmp.ne.s32.totalorder %s128, %s144
      %p146 = scmp.eq.s32.totalorder %s26, 0
      %p147 = por %p145, %p146
      %s148 = ssub.s32 %s20, %s27
      %p149 = scmp.eq.s32.totalorder %s148, 0
      %s151 = sadd.s32 %s150, 1
      %s152 = scalar_select %p149, %s150, %s151
      %p155 = pneg %p149
      %p156 = scmp.eq.s32.totalorder %s20, 7
      %p157 = por %p155, %p156
      %p158 = scmp.ne.s32.totalorder %s150, %s153
      %p159 = scmp.eq.s32.totalorder %s20, 0
      %p160 = por %p158, %p159
      %p161 = scmp.ne.s32.totalorder %s150, %s153
      %p162 = scmp.eq.s32.totalorder %s25, 7
      %p163 = por %p161, %p162
      %p164 = scmp.ne.s32.totalorder %s153, %s154
      %p165 = scmp.eq.s32.totalorder %s25, 0
      %p166 = por %p164, %p165
      %p167 = scmp.ne.s32.totalorder %s153, %s154
      %p168 = scmp.eq.s32.totalorder %s26, 7
      %p169 = por %p167, %p168
      %p171 = scmp.ne.s32.totalorder %s154, %s170
      %p172 = scmp.eq.s32.totalorder %s26, 0
      %p173 = por %p171, %p172
      %p174 = scmp.le.s32.totalorder 1, %s20
      %p175 = scmp.lt.s32.totalorder %s20, 9
      %p176 = pnand %p174, %p175
      %p177 = pneg %p176
      // Predicated region
      $region9: #{tpu_custom_call.1} parent=5 // pred_check
        _
      $region10: #{tpu_custom_call.1} parent=5 // pred_check_branch
        %179 = sbr.rel (%p176) target = $region12
      $region11: #{tpu_custom_call.1} parent=5 // pred_region
        %s180 = ssub.s32 %s20, 1
        // Predicated region
        $region13: #{tpu_custom_call.1} parent=11 // pred_check
          %p181 = pneg %p41
        $region14: #{tpu_custom_call.1} parent=11 // pred_check_branch
          %183 = sbr.rel (%p181) target = $region16
        $region15: #{tpu_custom_call.1} parent=11 // pred_region
          _
        $region16: #{tpu_custom_call.1} parent=11 // pred_fallthru
          _
        // Predicated region
        $region17: #{tpu_custom_call.1} parent=11 // pred_check
          %p184 = pneg %p88
        $region18: #{tpu_custom_call.1} parent=11 // pred_check_branch
          %186 = sbr.rel (%p184) target = $region20
        $region19: #{tpu_custom_call.1} parent=11 // pred_region
          _
        $region20: #{tpu_custom_call.1} parent=11 // pred_fallthru
          _
      $region12: #{tpu_custom_call.1} parent=5 // pred_fallthru
        _
      %p187 = scmp.lt.s32.totalorder %s20, 8
      // Predicated region
      $region21: #{tpu_custom_call.1} parent=5 // pred_check
        %p188 = pneg %p187
      $region22: #{tpu_custom_call.1} parent=5 // pred_check_branch
        %190 = sbr.rel (%p188) target = $region24
      $region23: #{tpu_custom_call.1} parent=5 // pred_region
        // Predicated region
        $region25: #{tpu_custom_call.1} parent=23 // pred_check
          %p191 = pneg %p61
        $region26: #{tpu_custom_call.1} parent=23 // pred_check_branch
          %193 = sbr.rel (%p191) target = $region28
        $region27: #{tpu_custom_call.1} parent=23 // pred_region
          %p194 = scmp.lt.s32.totalorder %s20, 7
          %s195 = scalar_select %p194, %s20, 7
          %s196 = smul.addr %s195, 8
          %s197 = scalar_lea.vmem %s1, %s196
        $region28: #{tpu_custom_call.1} parent=23 // pred_fallthru
          _
        // Predicated region
        $region29: #{tpu_custom_call.1} parent=23 // pred_check
          %p198 = pneg %p108
        $region30: #{tpu_custom_call.1} parent=23 // pred_check_branch
          %200 = sbr.rel (%p198) target = $region32
        $region31: #{tpu_custom_call.1} parent=23 // pred_region
          %s201 = sand.u32 %s98, 1
          %s202 = scalar_lea.sflag [#allocation3], %s201
          %s203 = sand.u32 %s98, 1
          %s204 = smul.addr %s203, 16
          %s205 = scalar_lea.vmem [#allocation2], %s204
          %s207 = ssub.s32 256, 256
          %208 = vsyncadd %s202, %s207
          %s209 = smul.addr %s20, 2
          %s210 = smul.addr %s209, 128
          %s211 = scalar_lea.hbm %s3, %s210
          %s212 = sshll.u32 %s205, 4
          %s213 = int_to_ptr.vmem [resolvable:$true] %s212
          %218 = dma.hbm_to_vmem [thread:$0]  %s211, 256, %s213, %s202, 128, 128, 8
        $region32: #{tpu_custom_call.1} parent=23 // pred_fallthru
          _
        // Predicated region
        $region33: #{tpu_custom_call.1} parent=23 // pred_check
          %p219 = pneg %p134
        $region34: #{tpu_custom_call.1} parent=23 // pred_check_branch
          %221 = sbr.rel (%p219) target = $region36
        $region35: #{tpu_custom_call.1} parent=23 // pred_region
          %s222 = sand.u32 %s124, 1
          %s223 = scalar_lea.sflag [#allocation6], %s222
          %s224 = sand.u32 %s124, 1
          %s225 = smul.addr %s224, 16
          %s226 = scalar_lea.vmem [#allocation5], %s225
          %s228 = ssub.s32 256, 256
          %229 = vsyncadd %s223, %s228
          %s230 = smul.addr %s20, 2
          %s231 = smul.addr %s230, 128
          %s232 = scalar_lea.hbm %s4, %s231
          %s233 = sshll.u32 %s226, 4
          %s234 = int_to_ptr.vmem [resolvable:$true] %s233
          %239 = dma.hbm_to_vmem [thread:$0]  %s232, 256, %s234, %s223, 128, 128, 8
        $region36: #{tpu_custom_call.1} parent=23 // pred_fallthru
          _
      $region24: #{tpu_custom_call.1} parent=5 // pred_fallthru
        _
      %p240 = scmp.le.s32.totalorder 1, %s20
      %p241 = scmp.lt.s32.totalorder %s20, 9
      %p242 = pnand %p240, %p241
      %p243 = pneg %p242
      // Predicated region
      $region37: #{tpu_custom_call.1} parent=5 // pred_check
        _
      $region38: #{tpu_custom_call.1} parent=5 // pred_check_branch
        %245 = sbr.rel (%p242) target = $region40
      $region39: #{tpu_custom_call.1} parent=5 // pred_region
        %s246 = ssub.s32 %s20, 1
        %s247 = sand.u32 %s101, 1
        %s248 = scalar_lea.sflag [#allocation3], %s247
        %s249 = sand.u32 %s101, 1
        %s250 = smul.addr %s249, 16
        %s251 = scalar_lea.vmem [#allocation2], %s250
        // Predicated region
        $region41: #{tpu_custom_call.1} parent=39 // pred_check
          %p252 = pneg %p114
        $region42: #{tpu_custom_call.1} parent=39 // pred_check_branch
          %254 = sbr.rel (%p252) target = $region44
        $region43: #{tpu_custom_call.1} parent=39 // pred_region
          %255 = dma.done %s248, 256
        $region44: #{tpu_custom_call.1} parent=39 // pred_fallthru
          _
        %s256 = sand.u32 %s127, 1
        %s257 = scalar_lea.sflag [#allocation6], %s256
        %s258 = sand.u32 %s127, 1
        %s259 = smul.addr %s258, 16
        %s260 = scalar_lea.vmem [#allocation5], %s259
        // Predicated region
        $region45: #{tpu_custom_call.1} parent=39 // pred_check
          %p261 = pneg %p140
        $region46: #{tpu_custom_call.1} parent=39 // pred_check_branch
          %263 = sbr.rel (%p261) target = $region48
        $region47: #{tpu_custom_call.1} parent=39 // pred_region
          %264 = dma.done %s257, 256
        $region48: #{tpu_custom_call.1} parent=39 // pred_fallthru
          _
        %p265 = pneg %p41
        %p266 = pneg %p38
        %p267 = scmp.lt.s32.totalorder %s25, 7
        %s268 = scalar_select %p267, %s25, 7
        %s269 = smul.addr %s268, 8
        %s270 = scalar_lea.vmem %s1, %s269
        %p271 = pneg %p67
        %p272 = pneg %p64
        %p273 = pneg %p88
        %p274 = pneg %p85
        %s275 = sand.u32 %s101, 1
        %s276 = scalar_lea.sflag [#allocation3], %s275
        %s277 = sand.u32 %s101, 1
        %s278 = smul.addr %s277, 16
        %s279 = scalar_lea.vmem [#allocation2], %s278
        %p280 = pneg %p114
        %p281 = pneg %p111
        %s282 = sand.u32 %s127, 1
        %s283 = scalar_lea.sflag [#allocation6], %s282
        %s284 = sand.u32 %s127, 1
        %s285 = smul.addr %s284, 16
        %s286 = scalar_lea.vmem [#allocation5], %s285
        %p287 = pneg %p140
        %p288 = pneg %p137
        %p289 = pneg %p166
        %p290 = pneg %p163
        %s291 = sand.u32 %s153, 1
        %s292 = scalar_lea.sflag [#allocation4], %s291
        %s293 = sand.u32 %s153, 1
        %s294 = smul.addr %s293, 16
        %s295 = scalar_lea.vmem [#allocation7], %s294
        %p296 = scmp.lt.s32.totalorder %s25, 7
        %s297 = scalar_select %p296, %s25, 7
        %s298 = smul.addr %s297, 8
        %s299 = scalar_lea.vmem %s1, %s298
        %v300 = vld [vmem:[%s299] sm:$0xff]
        %v301 = vlog2.pop %v300
        %v302 = vmul.f32 %v301, 0.6931472
        %v303 = vsub.f32 0.0, %v302
        %v304 = vlog2.pop %v303
        %v305 = vmul.f32 %v304, 0.6931472
        %v306 = vsub.f32 0.0, %v305
        %v307 = vld [vmem:[%s0] sm:$0x1]
        %v309 = vlaneseq
        %v310 = vshrl.u32 %v309, 7
        %v311 = vsub.s32 0, %v310
        %v312 = vrot.slane %v307, %v311
        %v314 = vadd.f32 %v312, %v306
        %v316 = vcombine.high %v314, %v314
        %v318 = vunpack.c.l.s4 1966171168
        %v319 = vunpack.c.0.s8 %v318
        %v320 = vlaneseq
        %v321 = vshrl.u32 %v320, 7
        %v322 = vsub.s32 %v319, %v321
        %v323 = vrot.slane %v314, %v322
        %v325 = vunpack.c.l.s4 1966171168
        %v326 = vunpack.c.0.s8 %v325
        %v327 = vlaneseq
        %v328 = vshrl.u32 %v327, 7
        %v329 = vsub.s32 %v326, %v328
        %v330 = vrot.slane %v316, %v329
        %v331 = vcombine.high %v323, %v323
        %v332 = vcombine.high %v330, %v330
        %v334 = vunpack.c.l.s4 1966171168
        %v335 = vunpack.c.0.s8 %v334
        %v336 = vlaneseq
        %v337 = vshrl.u32 %v336, 7
        %v338 = vsub.s32 %v335, %v337
        %v339 = vrot.slane %v323, %v338
        %v341 = vunpack.c.l.s4 1966171168
        %v342 = vunpack.c.0.s8 %v341
        %v343 = vlaneseq
        %v344 = vshrl.u32 %v343, 7
        %v345 = vsub.s32 %v342, %v344
        %v346 = vrot.slane %v330, %v345
        %v348 = vunpack.c.l.s4 1966171168
        %v349 = vunpack.c.0.s8 %v348
        %v350 = vlaneseq
        %v351 = vshrl.u32 %v350, 7
        %v352 = vsub.s32 %v349, %v351
        %v353 = vrot.slane %v331, %v352
        %v355 = vunpack.c.l.s4 1966171168
        %v356 = vunpack.c.0.s8 %v355
        %v357 = vlaneseq
        %v358 = vshrl.u32 %v357, 7
        %v359 = vsub.s32 %v356, %v358
        %v360 = vrot.slane %v332, %v359
        %v361 = vcombine.high %v339, %v339
        %v362 = vcombine.high %v346, %v346
        %v363 = vcombine.high %v353, %v353
        %v364 = vcombine.high %v360, %v360
        %v365 = vlaneseq
        %v366 = vshrl.u32 %v365, 7
        %v367 = vsub.s32 0, %v366
        %v368 = vrot.slane %v339, %v367
        %v369 = vlaneseq
        %v370 = vshrl.u32 %v369, 7
        %v371 = vsub.s32 0, %v370
        %v372 = vrot.slane %v353, %v371
        %v373 = vlaneseq
        %v374 = vshrl.u32 %v373, 7
        %v375 = vsub.s32 0, %v374
        %v376 = vrot.slane %v361, %v375
        %v377 = vlaneseq
        %v378 = vshrl.u32 %v377, 7
        %v379 = vsub.s32 0, %v378
        %v380 = vrot.slane %v363, %v379
        %v381 = vlaneseq
        %v382 = vshrl.u32 %v381, 7
        %v383 = vsub.s32 0, %v382
        %v384 = vrot.slane %v346, %v383
        %v385 = vlaneseq
        %v386 = vshrl.u32 %v385, 7
        %v387 = vsub.s32 0, %v386
        %v388 = vrot.slane %v360, %v387
        %v389 = vlaneseq
        %v390 = vshrl.u32 %v389, 7
        %v391 = vsub.s32 0, %v390
        %v392 = vrot.slane %v362, %v391
        %v393 = vlaneseq
        %v394 = vshrl.u32 %v393, 7
        %v395 = vsub.s32 0, %v394
        %v396 = vrot.slane %v364, %v395
        %405 = vxpose.xlu0.b32.start [1/16] %v368, 128
        %406 = vxpose.xlu0.b32.cont [2/16] %v368, 128
        %407 = vxpose.xlu0.b32.cont [3/16] 0.0, 128
        %408 = vxpose.xlu0.b32.cont [4/16] 0.0, 128
        %409 = vxpose.xlu0.b32.cont [5/16] 0.0, 128
        %410 = vxpose.xlu0.b32.cont [6/16] 0.0, 128
        %411 = vxpose.xlu0.b32.cont [7/16] 0.0, 128
        %412 = vxpose.xlu0.b32.cont [8/16] 0.0, 128
        %413 = vxpose.xlu0.b32.cont [9/16] 0.0, 128
        %414 = vxpose.xlu0.b32.cont [10/16] 0.0, 128
        %415 = vxpose.xlu0.b32.cont [11/16] 0.0, 128
        %416 = vxpose.xlu0.b32.cont [12/16] 0.0, 128
        %417 = vxpose.xlu0.b32.cont [13/16] 0.0, 128
        %418 = vxpose.xlu0.b32.cont [14/16] 0.0, 128
        %419 = vxpose.xlu0.b32.cont [15/16] 0.0, 128
        %420 = vxpose.xlu0.b32.end [16/16] 0.0, 128
        %v421 = vpop.trf.xlu0
        %v422 = vpop.trf.xlu0
        %v423 = vpop.trf.xlu0
        %v424 = vpop.trf.xlu0
        %v425 = vpop.trf.xlu0
        %v426 = vpop.trf.xlu0
        %v427 = vpop.trf.xlu0
        %v428 = vpop.trf.xlu0
        %v429 = vpop.trf.xlu0
        %v430 = vpop.trf.xlu0
        %v431 = vpop.trf.xlu0
        %v432 = vpop.trf.xlu0
        %v433 = vpop.trf.xlu0
        %v434 = vpop.trf.xlu0
        %v435 = vpop.trf.xlu0
        %v436 = vpop.trf.xlu0
        %437 = vxpose.xlu0.b32.start [1/16] %v372, 128
        %438 = vxpose.xlu0.b32.cont [2/16] %v372, 128
        %439 = vxpose.xlu0.b32.cont [3/16] 0.0, 128
        %440 = vxpose.xlu0.b32.cont [4/16] 0.0, 128
        %441 = vxpose.xlu0.b32.cont [5/16] 0.0, 128
        %442 = vxpose.xlu0.b32.cont [6/16] 0.0, 128
        %443 = vxpose.xlu0.b32.cont [7/16] 0.0, 128
        %444 = vxpose.xlu0.b32.cont [8/16] 0.0, 128
        %445 = vxpose.xlu0.b32.cont [9/16] 0.0, 128
        %446 = vxpose.xlu0.b32.cont [10/16] 0.0, 128
        %447 = vxpose.xlu0.b32.cont [11/16] 0.0, 128
        %448 = vxpose.xlu0.b32.cont [12/16] 0.0, 128
        %449 = vxpose.xlu0.b32.cont [13/16] 0.0, 128
        %450 = vxpose.xlu0.b32.cont [14/16] 0.0, 128
        %451 = vxpose.xlu0.b32.cont [15/16] 0.0, 128
        %452 = vxpose.xlu0.b32.end [16/16] 0.0, 128
        %v453 = vpop.trf.xlu0
        %v454 = vpop.trf.xlu0
        %v455 = vpop.trf.xlu0
        %v456 = vpop.trf.xlu0
        %v457 = vpop.trf.xlu0
        %v458 = vpop.trf.xlu0
        %v459 = vpop.trf.xlu0
        %v460 = vpop.trf.xlu0
        %v461 = vpop.trf.xlu0
        %v462 = vpop.trf.xlu0
        %v463 = vpop.trf.xlu0
        %v464 = vpop.trf.xlu0
        %v465 = vpop.trf.xlu0
        %v466 = vpop.trf.xlu0
        %v467 = vpop.trf.xlu0
        %v468 = vpop.trf.xlu0
        %469 = vxpose.xlu0.b32.start [1/16] %v376, 128
        %470 = vxpose.xlu0.b32.cont [2/16] %v376, 128
        %471 = vxpose.xlu0.b32.cont [3/16] 0.0, 128
        %472 = vxpose.xlu0.b32.cont [4/16] 0.0, 128
        %473 = vxpose.xlu0.b32.cont [5/16] 0.0, 128
        %474 = vxpose.xlu0.b32.cont [6/16] 0.0, 128
        %475 = vxpose.xlu0.b32.cont [7/16] 0.0, 128
        %476 = vxpose.xlu0.b32.cont [8/16] 0.0, 128
        %477 = vxpose.xlu0.b32.cont [9/16] 0.0, 128
        %478 = vxpose.xlu0.b32.cont [10/16] 0.0, 128
        %479 = vxpose.xlu0.b32.cont [11/16] 0.0, 128
        %480 = vxpose.xlu0.b32.cont [12/16] 0.0, 128
        %481 = vxpose.xlu0.b32.cont [13/16] 0.0, 128
        %482 = vxpose.xlu0.b32.cont [14/16] 0.0, 128
        %483 = vxpose.xlu0.b32.cont [15/16] 0.0, 128
        %484 = vxpose.xlu0.b32.end [16/16] 0.0, 128
        %v485 = vpop.trf.xlu0
        %v486 = vpop.trf.xlu0
        %v487 = vpop.trf.xlu0
        %v488 = vpop.trf.xlu0
        %v489 = vpop.trf.xlu0
        %v490 = vpop.trf.xlu0
        %v491 = vpop.trf.xlu0
        %v492 = vpop.trf.xlu0
        %v493 = vpop.trf.xlu0
        %v494 = vpop.trf.xlu0
        %v495 = vpop.trf.xlu0
        %v496 = vpop.trf.xlu0
        %v497 = vpop.trf.xlu0
        %v498 = vpop.trf.xlu0
        %v499 = vpop.trf.xlu0
        %v500 = vpop.trf.xlu0
        %501 = vxpose.xlu0.b32.start [1/16] %v380, 128
        %502 = vxpose.xlu0.b32.cont [2/16] %v380, 128
        %503 = vxpose.xlu0.b32.cont [3/16] 0.0, 128
        %504 = vxpose.xlu0.b32.cont [4/16] 0.0, 128
        %505 = vxpose.xlu0.b32.cont [5/16] 0.0, 128
        %506 = vxpose.xlu0.b32.cont [6/16] 0.0, 128
        %507 = vxpose.xlu0.b32.cont [7/16] 0.0, 128
        %508 = vxpose.xlu0.b32.cont [8/16] 0.0, 128
        %509 = vxpose.xlu0.b32.cont [9/16] 0.0, 128
        %510 = vxpose.xlu0.b32.cont [10/16] 0.0, 128
        %511 = vxpose.xlu0.b32.cont [11/16] 0.0, 128
        %512 = vxpose.xlu0.b32.cont [12/16] 0.0, 128
        %513 = vxpose.xlu0.b32.cont [13/16] 0.0, 128
        %514 = vxpose.xlu0.b32.cont [14/16] 0.0, 128
        %515 = vxpose.xlu0.b32.cont [15/16] 0.0, 128
        %516 = vxpose.xlu0.b32.end [16/16] 0.0, 128
        %v517 = vpop.trf.xlu0
        %v518 = vpop.trf.xlu0
        %v519 = vpop.trf.xlu0
        %v520 = vpop.trf.xlu0
        %v521 = vpop.trf.xlu0
        %v522 = vpop.trf.xlu0
        %v523 = vpop.trf.xlu0
        %v524 = vpop.trf.xlu0
        %v525 = vpop.trf.xlu0
        %v526 = vpop.trf.xlu0
        %v527 = vpop.trf.xlu0
        %v528 = vpop.trf.xlu0
        %v529 = vpop.trf.xlu0
        %v530 = vpop.trf.xlu0
        %v531 = vpop.trf.xlu0
        %v532 = vpop.trf.xlu0
        %533 = vxpose.xlu0.b32.start [1/16] %v384, 128
        %534 = vxpose.xlu0.b32.cont [2/16] %v384, 128
        %535 = vxpose.xlu0.b32.cont [3/16] 0.0, 128
        %536 = vxpose.xlu0.b32.cont [4/16] 0.0, 128
        %537 = vxpose.xlu0.b32.cont [5/16] 0.0, 128
        %538 = vxpose.xlu0.b32.cont [6/16] 0.0, 128
        %539 = vxpose.xlu0.b32.cont [7/16] 0.0, 128
        %540 = vxpose.xlu0.b32.cont [8/16] 0.0, 128
        %541 = vxpose.xlu0.b32.cont [9/16] 0.0, 128
        %542 = vxpose.xlu0.b32.cont [10/16] 0.0, 128
        %543 = vxpose.xlu0.b32.cont [11/16] 0.0, 128
        %544 = vxpose.xlu0.b32.cont [12/16] 0.0, 128
        %545 = vxpose.xlu0.b32.cont [13/16] 0.0, 128
        %546 = vxpose.xlu0.b32.cont [14/16] 0.0, 128
        %547 = vxpose.xlu0.b32.cont [15/16] 0.0, 128
        %548 = vxpose.xlu0.b32.end [16/16] 0.0, 128
        %v549 = vpop.trf.xlu0
        %v550 = vpop.trf.xlu0
        %v551 = vpop.trf.xlu0
        %v552 = vpop.trf.xlu0
        %v553 = vpop.trf.xlu0
        %v554 = vpop.trf.xlu0
        %v555 = vpop.trf.xlu0
        %v556 = vpop.trf.xlu0
        %v557 = vpop.trf.xlu0
        %v558 = vpop.trf.xlu0
        %v559 = vpop.trf.xlu0
        %v560 = vpop.trf.xlu0
        %v561 = vpop.trf.xlu0
        %v562 = vpop.trf.xlu0
        %v563 = vpop.trf.xlu0
        %v564 = vpop.trf.xlu0
        %565 = vxpose.xlu0.b32.start [1/16] %v388, 128
        %566 = vxpose.xlu0.b32.cont [2/16] %v388, 128
        %567 = vxpose.xlu0.b32.cont [3/16] 0.0, 128
        %568 = vxpose.xlu0.b32.cont [4/16] 0.0, 128
        %569 = vxpose.xlu0.b32.cont [5/16] 0.0, 128
        %570 = vxpose.xlu0.b32.cont [6/16] 0.0, 128
        %571 = vxpose.xlu0.b32.cont [7/16] 0.0, 128
        %572 = vxpose.xlu0.b32.cont [8/16] 0.0, 128
        %573 = vxpose.xlu0.b32.cont [9/16] 0.0, 128
        %574 = vxpose.xlu0.b32.cont [10/16] 0.0, 128
        %575 = vxpose.xlu0.b32.cont [11/16] 0.0, 128
        %576 = vxpose.xlu0.b32.cont [12/16] 0.0, 128
        %577 = vxpose.xlu0.b32.cont [13/16] 0.0, 128
        %578 = vxpose.xlu0.b32.cont [14/16] 0.0, 128
        %579 = vxpose.xlu0.b32.cont [15/16] 0.0, 128
        %580 = vxpose.xlu0.b32.end [16/16] 0.0, 128
        %v581 = vpop.trf.xlu0
        %v582 = vpop.trf.xlu0
        %v583 = vpop.trf.xlu0
        %v584 = vpop.trf.xlu0
        %v585 = vpop.trf.xlu0
        %v586 = vpop.trf.xlu0
        %v587 = vpop.trf.xlu0
        %v588 = vpop.trf.xlu0
        %v589 = vpop.trf.xlu0
        %v590 = vpop.trf.xlu0
        %v591 = vpop.trf.xlu0
        %v592 = vpop.trf.xlu0
        %v593 = vpop.trf.xlu0
        %v594 = vpop.trf.xlu0
        %v595 = vpop.trf.xlu0
        %v596 = vpop.trf.xlu0
        %597 = vxpose.xlu0.b32.start [1/16] %v392, 128
        %598 = vxpose.xlu0.b32.cont [2/16] %v392, 128
        %599 = vxpose.xlu0.b32.cont [3/16] 0.0, 128
        %600 = vxpose.xlu0.b32.cont [4/16] 0.0, 128
        %601 = vxpose.xlu0.b32.cont [5/16] 0.0, 128
        %602 = vxpose.xlu0.b32.cont [6/16] 0.0, 128
        %603 = vxpose.xlu0.b32.cont [7/16] 0.0, 128
        %604 = vxpose.xlu0.b32.cont [8/16] 0.0, 128
        %605 = vxpose.xlu0.b32.cont [9/16] 0.0, 128
        %606 = vxpose.xlu0.b32.cont [10/16] 0.0, 128
        %607 = vxpose.xlu0.b32.cont [11/16] 0.0, 128
        %608 = vxpose.xlu0.b32.cont [12/16] 0.0, 128
        %609 = vxpose.xlu0.b32.cont [13/16] 0.0, 128
        %610 = vxpose.xlu0.b32.cont [14/16] 0.0, 128
        %611 = vxpose.xlu0.b32.cont [15/16] 0.0, 128
        %612 = vxpose.xlu0.b32.end [16/16] 0.0, 128
        %v613 = vpop.trf.xlu0
        %v614 = vpop.trf.xlu0
        %v615 = vpop.trf.xlu0
        %v616 = vpop.trf.xlu0
        %v617 = vpop.trf.xlu0
        %v618 = vpop.trf.xlu0
        %v619 = vpop.trf.xlu0
        %v620 = vpop.trf.xlu0
        %v621 = vpop.trf.xlu0
        %v622 = vpop.trf.xlu0
        %v623 = vpop.trf.xlu0
        %v624 = vpop.trf.xlu0
        %v625 = vpop.trf.xlu0
        %v626 = vpop.trf.xlu0
        %v627 = vpop.trf.xlu0
        %v628 = vpop.trf.xlu0
        %629 = vxpose.xlu0.b32.start [1/16] %v396, 128
        %630 = vxpose.xlu0.b32.cont [2/16] %v396, 128
        %631 = vxpose.xlu0.b32.cont [3/16] 0.0, 128
        %632 = vxpose.xlu0.b32.cont [4/16] 0.0, 128
        %633 = vxpose.xlu0.b32.cont [5/16] 0.0, 128
        %634 = vxpose.xlu0.b32.cont [6/16] 0.0, 128
        %635 = vxpose.xlu0.b32.cont [7/16] 0.0, 128
        %636 = vxpose.xlu0.b32.cont [8/16] 0.0, 128
        %637 = vxpose.xlu0.b32.cont [9/16] 0.0, 128
        %638 = vxpose.xlu0.b32.cont [10/16] 0.0, 128
        %639 = vxpose.xlu0.b32.cont [11/16] 0.0, 128
        %640 = vxpose.xlu0.b32.cont [12/16] 0.0, 128
        %641 = vxpose.xlu0.b32.cont [13/16] 0.0, 128
        %642 = vxpose.xlu0.b32.cont [14/16] 0.0, 128
        %643 = vxpose.xlu0.b32.cont [15/16] 0.0, 128
        %644 = vxpose.xlu0.b32.end [16/16] 0.0, 128
        %v645 = vpop.trf.xlu0
        %v646 = vpop.trf.xlu0
        %v647 = vpop.trf.xlu0
        %v648 = vpop.trf.xlu0
        %v649 = vpop.trf.xlu0
        %v650 = vpop.trf.xlu0
        %v651 = vpop.trf.xlu0
        %v652 = vpop.trf.xlu0
        %v653 = vpop.trf.xlu0
        %v654 = vpop.trf.xlu0
        %v655 = vpop.trf.xlu0
        %v656 = vpop.trf.xlu0
        %v657 = vpop.trf.xlu0
        %v658 = vpop.trf.xlu0
        %v659 = vpop.trf.xlu0
        %v660 = vpop.trf.xlu0
        %v661 = vsub.f32 %v421, %v368
        %v662 = vsub.f32 %v422, %v368
        %v663 = vsub.f32 %v453, %v372
        %v664 = vsub.f32 %v454, %v372
        %v665 = vsub.f32 %v485, %v376
        %v666 = vsub.f32 %v486, %v376
        %v667 = vsub.f32 %v517, %v380
        %v668 = vsub.f32 %v518, %v380
        %v669 = vsub.f32 %v549, %v384
        %v670 = vsub.f32 %v550, %v384
        %v671 = vsub.f32 %v581, %v388
        %v672 = vsub.f32 %v582, %v388
        %v673 = vsub.f32 %v613, %v392
        %v674 = vsub.f32 %v614, %v392
        %v675 = vsub.f32 %v645, %v396
        %v676 = vsub.f32 %v646, %v396
        %v677 = vand.u32 2147483647, %v661
        %v678 = vand.u32 2147483647, %v662
        %v679 = vand.u32 2147483647, %v663
        %v680 = vand.u32 2147483647, %v664
        %v681 = vand.u32 2147483647, %v665
        %v682 = vand.u32 2147483647, %v666
        %v683 = vand.u32 2147483647, %v667
        %v684 = vand.u32 2147483647, %v668
        %v685 = vand.u32 2147483647, %v669
        %v686 = vand.u32 2147483647, %v670
        %v687 = vand.u32 2147483647, %v671
        %v688 = vand.u32 2147483647, %v672
        %v689 = vand.u32 2147483647, %v673
        %v690 = vand.u32 2147483647, %v674
        %v691 = vand.u32 2147483647, %v675
        %v692 = vand.u32 2147483647, %v676
        %vm693 = vcmask 130048
        %v694 = vsel %vm693, %v677, 0.0
        %v695 = vsel %vm693, %v678, 0.0
        %v696 = vadd.f32 %v694, %v695
        %v697 = vrot.slane %v696, 4
        %v698 = vadd.f32 %v696, %v697
        %v699 = vrot.slane %v698, 2
        %v700 = vadd.f32 %v698, %v699
        %v701 = vrot.slane %v700, 1
        %v702 = vadd.f32 %v700, %v701
        %v703 = vsel %vm693, %v679, 0.0
        %v704 = vsel %vm693, %v680, 0.0
        %v705 = vadd.f32 %v703, %v704
        %v706 = vrot.slane %v705, 4
        %v707 = vadd.f32 %v705, %v706
        %v708 = vrot.slane %v707, 2
        %v709 = vadd.f32 %v707, %v708
        %v710 = vrot.slane %v709, 1
        %v711 = vadd.f32 %v709, %v710
        %v712 = vsel %vm693, %v681, 0.0
        %v713 = vsel %vm693, %v682, 0.0
        %v714 = vadd.f32 %v712, %v713
        %v715 = vrot.slane %v714, 4
        %v716 = vadd.f32 %v714, %v715
        %v717 = vrot.slane %v716, 2
        %v718 = vadd.f32 %v716, %v717
        %v719 = vrot.slane %v718, 1
        %v720 = vadd.f32 %v718, %v719
        %v721 = vsel %vm693, %v683, 0.0
        %v722 = vsel %vm693, %v684, 0.0
        %v723 = vadd.f32 %v721, %v722
        %v724 = vrot.slane %v723, 4
        %v725 = vadd.f32 %v723, %v724
        %v726 = vrot.slane %v725, 2
        %v727 = vadd.f32 %v725, %v726
        %v728 = vrot.slane %v727, 1
        %v729 = vadd.f32 %v727, %v728
        %v730 = vsel %vm693, %v685, 0.0
        %v731 = vsel %vm693, %v686, 0.0
        %v732 = vadd.f32 %v730, %v731
        %v733 = vrot.slane %v732, 4
        %v734 = vadd.f32 %v732, %v733
        %v735 = vrot.slane %v734, 2
        %v736 = vadd.f32 %v734, %v735
        %v737 = vrot.slane %v736, 1
        %v738 = vadd.f32 %v736, %v737
        %v739 = vsel %vm693, %v687, 0.0
        %v740 = vsel %vm693, %v688, 0.0
        %v741 = vadd.f32 %v739, %v740
        %v742 = vrot.slane %v741, 4
        %v743 = vadd.f32 %v741, %v742
        %v744 = vrot.slane %v743, 2
        %v745 = vadd.f32 %v743, %v744
        %v746 = vrot.slane %v745, 1
        %v747 = vadd.f32 %v745, %v746
        %v748 = vsel %vm693, %v689, 0.0
        %v749 = vsel %vm693, %v690, 0.0
        %v750 = vadd.f32 %v748, %v749
        %v751 = vrot.slane %v750, 4
        %v752 = vadd.f32 %v750, %v751
        %v753 = vrot.slane %v752, 2
        %v754 = vadd.f32 %v752, %v753
        %v755 = vrot.slane %v754, 1
        %v756 = vadd.f32 %v754, %v755
        %v757 = vsel %vm693, %v691, 0.0
        %v758 = vsel %vm693, %v692, 0.0
        %v759 = vadd.f32 %v757, %v758
        %v760 = vrot.slane %v759, 4
        %v761 = vadd.f32 %v759, %v760
        %v762 = vrot.slane %v761, 2
        %v763 = vadd.f32 %v761, %v762
        %v764 = vrot.slane %v763, 1
        %v765 = vadd.f32 %v763, %v764
        %v766 = vlaneseq
        %v767 = vshrl.u32 %v766, 7
        %v768 = vadd.s32 %v767, 8
        %v769 = vcvt.s32.f32 %v767
        %v770 = vcvt.s32.f32 %v768
        %v771 = vmul.f32 %v769, 2.0
        %v772 = vmul.f32 %v770, 2.0
        %v773 = vsub.f32 15.0, %v771
        %v774 = vsub.f32 15.0, %v772
        %v775 = vmul.f32 %v368, %v773
        %v776 = vmul.f32 %v368, %v774
        %v777 = vmul.f32 %v372, %v773
        %v778 = vmul.f32 %v372, %v774
        %v779 = vmul.f32 %v376, %v773
        %v780 = vmul.f32 %v376, %v774
        %v781 = vmul.f32 %v380, %v773
        %v782 = vmul.f32 %v380, %v774
        %v783 = vmul.f32 %v384, %v773
        %v784 = vmul.f32 %v384, %v774
        %v785 = vmul.f32 %v388, %v773
        %v786 = vmul.f32 %v388, %v774
        %v787 = vmul.f32 %v392, %v773
        %v788 = vmul.f32 %v392, %v774
        %v789 = vmul.f32 %v396, %v773
        %v790 = vmul.f32 %v396, %v774
        %v791 = vsub.f32 %v775, %v702
        %v792 = vsub.f32 %v776, %v702
        %v793 = vsub.f32 %v777, %v711
        %v794 = vsub.f32 %v778, %v711
        %v795 = vsub.f32 %v779, %v720
        %v796 = vsub.f32 %v780, %v720
        %v797 = vsub.f32 %v781, %v729
        %v798 = vsub.f32 %v782, %v729
        %v799 = vsub.f32 %v783, %v738
        %v800 = vsub.f32 %v784, %v738
        %v801 = vsub.f32 %v785, %v747
        %v802 = vsub.f32 %v786, %v747
        %v803 = vsub.f32 %v787, %v756
        %v804 = vsub.f32 %v788, %v756
        %v805 = vsub.f32 %v789, %v765
        %v806 = vsub.f32 %v790, %v765
        %v807 = vsel %vm693, %v791, -inf
        %808 = vmax.xlane.f32.xlu0 %v807
        %v809 = vpop.xlane.xlu0 %808
        %v810 = vsel %vm693, %v792, -inf
        %811 = vmax.xlane.f32.xlu0 %v810
        %v812 = vpop.xlane.xlu0 %811
        %v813 = vsel %vm693, %v793, -inf
        %814 = vmax.xlane.f32.xlu0 %v813
        %v815 = vpop.xlane.xlu0 %814
        %v816 = vsel %vm693, %v794, -inf
        %817 = vmax.xlane.f32.xlu0 %v816
        %v818 = vpop.xlane.xlu0 %817
        %v819 = vsel %vm693, %v795, -inf
        %820 = vmax.xlane.f32.xlu0 %v819
        %v821 = vpop.xlane.xlu0 %820
        %v822 = vsel %vm693, %v796, -inf
        %823 = vmax.xlane.f32.xlu0 %v822
        %v824 = vpop.xlane.xlu0 %823
        %v825 = vsel %vm693, %v797, -inf
        %826 = vmax.xlane.f32.xlu0 %v825
        %v827 = vpop.xlane.xlu0 %826
        %v828 = vsel %vm693, %v798, -inf
        %829 = vmax.xlane.f32.xlu0 %v828
        %v830 = vpop.xlane.xlu0 %829
        %v831 = vsel %vm693, %v799, -inf
        %832 = vmax.xlane.f32.xlu0 %v831
        %v833 = vpop.xlane.xlu0 %832
        %v834 = vsel %vm693, %v800, -inf
        %835 = vmax.xlane.f32.xlu0 %v834
        %v836 = vpop.xlane.xlu0 %835
        %v837 = vsel %vm693, %v801, -inf
        %838 = vmax.xlane.f32.xlu0 %v837
        %v839 = vpop.xlane.xlu0 %838
        %v840 = vsel %vm693, %v802, -inf
        %841 = vmax.xlane.f32.xlu0 %v840
        %v842 = vpop.xlane.xlu0 %841
        %v843 = vsel %vm693, %v803, -inf
        %844 = vmax.xlane.f32.xlu0 %v843
        %v845 = vpop.xlane.xlu0 %844
        %v846 = vsel %vm693, %v804, -inf
        %847 = vmax.xlane.f32.xlu0 %v846
        %v848 = vpop.xlane.xlu0 %847
        %v849 = vsel %vm693, %v805, -inf
        %850 = vmax.xlane.f32.xlu0 %v849
        %v851 = vpop.xlane.xlu0 %850
        %v852 = vsel %vm693, %v806, -inf
        %853 = vmax.xlane.f32.xlu0 %v852
        %v854 = vpop.xlane.xlu0 %853
        %v855 = vsub.f32 %v791, %v809
        %v856 = vsub.f32 %v792, %v812
        %v857 = vsub.f32 %v793, %v815
        %v858 = vsub.f32 %v794, %v818
        %v859 = vsub.f32 %v795, %v821
        %v860 = vsub.f32 %v796, %v824
        %v861 = vsub.f32 %v797, %v827
        %v862 = vsub.f32 %v798, %v830
        %v863 = vsub.f32 %v799, %v833
        %v864 = vsub.f32 %v800, %v836
        %v865 = vsub.f32 %v801, %v839
        %v866 = vsub.f32 %v802, %v842
        %v867 = vsub.f32 %v803, %v845
        %v868 = vsub.f32 %v804, %v848
        %v869 = vsub.f32 %v805, %v851
        %v870 = vsub.f32 %v806, %v854
        %v871 = vmul.f32 %v855, 1.442695
        %v872 = vpow.pop %v871
        %v873 = vmul.f32 %v856, 1.442695
        %v874 = vpow.pop %v873
        %v875 = vmul.f32 %v857, 1.442695
        %v876 = vpow.pop %v875
        %v877 = vmul.f32 %v858, 1.442695
        %v878 = vpow.pop %v877
        %v879 = vmul.f32 %v859, 1.442695
        %v880 = vpow.pop %v879
        %v881 = vmul.f32 %v860, 1.442695
        %v882 = vpow.pop %v881
        %v883 = vmul.f32 %v861, 1.442695
        %v884 = vpow.pop %v883
        %v885 = vmul.f32 %v862, 1.442695
        %v886 = vpow.pop %v885
        %v887 = vmul.f32 %v863, 1.442695
        %v888 = vpow.pop %v887
        %v889 = vmul.f32 %v864, 1.442695
        %v890 = vpow.pop %v889
        %v891 = vmul.f32 %v865, 1.442695
        %v892 = vpow.pop %v891
        %v893 = vmul.f32 %v866, 1.442695
        %v894 = vpow.pop %v893
        %v895 = vmul.f32 %v867, 1.442695
        %v896 = vpow.pop %v895
        %v897 = vmul.f32 %v868, 1.442695
        %v898 = vpow.pop %v897
        %v899 = vmul.f32 %v869, 1.442695
        %v900 = vpow.pop %v899
        %v901 = vmul.f32 %v870, 1.442695
        %v902 = vpow.pop %v901
        %v903 = vsel %vm693, %v872, 0.0
        %904 = vadd.xlane.f32.xlu0 %v903
        %v905 = vpop.xlane.xlu0 %904
        %v906 = vsel %vm693, %v874, 0.0
        %907 = vadd.xlane.f32.xlu0 %v906
        %v908 = vpop.xlane.xlu0 %907
        %v909 = vsel %vm693, %v876, 0.0
        %910 = vadd.xlane.f32.xlu0 %v909
        %v911 = vpop.xlane.xlu0 %910
        %v912 = vsel %vm693, %v878, 0.0
        %913 = vadd.xlane.f32.xlu0 %v912
        %v914 = vpop.xlane.xlu0 %913
        %v915 = vsel %vm693, %v880, 0.0
        %916 = vadd.xlane.f32.xlu0 %v915
        %v917 = vpop.xlane.xlu0 %916
        %v918 = vsel %vm693, %v882, 0.0
        %919 = vadd.xlane.f32.xlu0 %v918
        %v920 = vpop.xlane.xlu0 %919
        %v921 = vsel %vm693, %v884, 0.0
        %922 = vadd.xlane.f32.xlu0 %v921
        %v923 = vpop.xlane.xlu0 %922
        %v924 = vsel %vm693, %v886, 0.0
        %925 = vadd.xlane.f32.xlu0 %v924
        %v926 = vpop.xlane.xlu0 %925
        %v927 = vsel %vm693, %v888, 0.0
        %928 = vadd.xlane.f32.xlu0 %v927
        %v929 = vpop.xlane.xlu0 %928
        %v930 = vsel %vm693, %v890, 0.0
        %931 = vadd.xlane.f32.xlu0 %v930
        %v932 = vpop.xlane.xlu0 %931
        %v933 = vsel %vm693, %v892, 0.0
        %934 = vadd.xlane.f32.xlu0 %v933
        %v935 = vpop.xlane.xlu0 %934
        %v936 = vsel %vm693, %v894, 0.0
        %937 = vadd.xlane.f32.xlu0 %v936
        %v938 = vpop.xlane.xlu0 %937
        %v939 = vsel %vm693, %v896, 0.0
        %940 = vadd.xlane.f32.xlu0 %v939
        %v941 = vpop.xlane.xlu0 %940
        %v942 = vsel %vm693, %v898, 0.0
        %943 = vadd.xlane.f32.xlu0 %v942
        %v944 = vpop.xlane.xlu0 %943
        %v945 = vsel %vm693, %v900, 0.0
        %946 = vadd.xlane.f32.xlu0 %v945
        %v947 = vpop.xlane.xlu0 %946
        %v948 = vsel %vm693, %v902, 0.0
        %949 = vadd.xlane.f32.xlu0 %v948
        %v950 = vpop.xlane.xlu0 %949
        %v951 = vrcp.pop %v905
        %v952 = vrcp.pop %v908
        %v953 = vrcp.pop %v911
        %v954 = vrcp.pop %v914
        %v955 = vrcp.pop %v917
        %v956 = vrcp.pop %v920
        %v957 = vrcp.pop %v923
        %v958 = vrcp.pop %v926
        %v959 = vrcp.pop %v929
        %v960 = vrcp.pop %v932
        %v961 = vrcp.pop %v935
        %v962 = vrcp.pop %v938
        %v963 = vrcp.pop %v941
        %v964 = vrcp.pop %v944
        %v965 = vrcp.pop %v947
        %v966 = vrcp.pop %v950
        %v967 = vmul.f32 %v872, %v951
        %v968 = vmul.f32 %v874, %v952
        %v969 = vmul.f32 %v876, %v953
        %v970 = vmul.f32 %v878, %v954
        %v971 = vmul.f32 %v880, %v955
        %v972 = vmul.f32 %v882, %v956
        %v973 = vmul.f32 %v884, %v957
        %v974 = vmul.f32 %v886, %v958
        %v975 = vmul.f32 %v888, %v959
        %v976 = vmul.f32 %v890, %v960
        %v977 = vmul.f32 %v892, %v961
        %v978 = vmul.f32 %v894, %v962
        %v979 = vmul.f32 %v896, %v963
        %v980 = vmul.f32 %v898, %v964
        %v981 = vmul.f32 %v900, %v965
        %v982 = vmul.f32 %v902, %v966
        %v983 = vlaneseq
        %v984 = vand.u32 %v983, 127
        %vm985 = vcmp.gt.s32.totalorder %v984, %v767
        %vm986 = vcmp.gt.s32.totalorder %v984, %v768
        %v987 = vsel %vm985, 1, 0
        %v988 = vsel %vm986, 1, 0
        %v989 = vcvt.s32.f32 %v987
        %v990 = vcvt.s32.f32 %v988
        %v992 = vsel %vm693, %v967, 0
        %v995 = vsel %vm693, %v968, 0
        %997 = vmatprep.subr.mxu0 0.0
        %998 = vmatpush1.msra.mxu0 %v989
        %999 = vmatprep.subr.mxu0 0.0
        %1000 = vmatpush1.msra.mxu0 %v990
        %1001 = vmatprep.subr.mxu0 0.0
        %1002 = vmatpush1.msra.mxu0 0.0
        %1003 = vmatprep.subr.mxu0 0.0
        %1004 = vmatpush1.msra.mxu0 0.0
        %1005 = vmatprep.subr.mxu0 0.0
        %1006 = vmatpush1.msra.mxu0 0.0
        %1007 = vmatprep.subr.mxu0 0.0
        %1008 = vmatpush1.msra.mxu0 0.0
        %1009 = vmatprep.subr.mxu0 0.0
        %1010 = vmatpush1.msra.mxu0 0.0
        %1011 = vmatprep.subr.mxu0 0.0
        %1012 = vmatpush1.msra.mxu0 0.0
        %1013 = vmatprep.subr.mxu0 0.0
        %1014 = vmatpush1.msra.mxu0 0.0
        %1015 = vmatprep.subr.mxu0 0.0
        %1016 = vmatpush1.msra.mxu0 0.0
        %1017 = vmatprep.subr.mxu0 0.0
        %1018 = vmatpush1.msra.mxu0 0.0
        %1019 = vmatprep.subr.mxu0 0.0
        %1020 = vmatpush1.msra.mxu0 0.0
        %1021 = vmatprep.subr.mxu0 0.0
        %1022 = vmatpush1.msra.mxu0 0.0
        %1023 = vmatprep.subr.mxu0 0.0
        %1024 = vmatpush1.msra.mxu0 0.0
        %1025 = vmatprep.subr.mxu0 0.0
        %1026 = vmatpush1.msra.mxu0 0.0
        %1027 = vmatprep.subr.mxu0 0.0
        %1028 = vmatpush1.msra.mxu0 0.0
        %1029 = vmatprep.subr.mxu0 0.0
        %1030 = vmatpush1.msra.mxu0 0.0
        %1031 = vmatprep.subr.mxu0 0.0
        %1032 = vmatpush1.msra.mxu0 0.0
        %1033 = vmatprep.subr.mxu0 0.0
        %1034 = vmatpush1.msra.mxu0 0.0
        %1035 = vmatprep.subr.mxu0 0.0
        %1036 = vmatpush1.msra.mxu0 0.0
        %1037 = vmatprep.subr.mxu0 0.0
        %1038 = vmatpush1.msra.mxu0 0.0
        %1039 = vmatprep.subr.mxu0 0.0
        %1040 = vmatpush1.msra.mxu0 0.0
        %1041 = vmatprep.subr.mxu0 0.0
        %1042 = vmatpush1.msra.mxu0 0.0
        %1043 = vmatprep.subr.mxu0 0.0
        %1044 = vmatpush1.msra.mxu0 0.0
        %1045 = vmatprep.subr.mxu0 0.0
        %1046 = vmatpush1.msra.mxu0 0.0
        %1047 = vmatprep.subr.mxu0 0.0
        %1048 = vmatpush1.msra.mxu0 0.0
        %1049 = vmatprep.subr.mxu0 0.0
        %1050 = vmatpush1.msra.mxu0 0.0
        %1051 = vmatprep.subr.mxu0 0.0
        %1052 = vmatpush1.msra.mxu0 0.0
        %1053 = vmatprep.subr.mxu0 0.0
        %1054 = vmatpush1.msra.mxu0 0.0
        %1055 = vmatprep.subr.mxu0 0.0
        %1056 = vmatpush1.msra.mxu0 0.0
        %1057 = vmatprep.subr.mxu0 0.0
        %1058 = vmatpush1.msra.mxu0 0.0
        %1059 = vmatprep.subr.mxu0 0.0
        %1060 = vmatpush1.msra.mxu0 0.0
        %1061 = vmatprep.mubr.f32.mxu0 0.0
        %1062 = vmatmul.mubr.f32.gmra.mrb[0].mxu0 %v992
        %v1063 = vpop.f32.mrb[0].mxu0
        %v1064 = vadd.f32 0.0, %v1063
        %v1065 = vpop.f32.mrb[0].mxu0
        %1066 = vmatprep.mubr.f32.mxu0 0.0
        %1067 = vmatmul.mubr.f32.gmra.mrb[0].mxu0 %v995
        %v1068 = vpop.f32.mrb[0].mxu0
        %v1069 = vadd.f32 0.0, %v1068
        %v1070 = vpop.f32.mrb[0].mxu0
        %1071 = vdwg.mxu0
        %v1073 = vsel %vm693, %v969, 0
        %v1076 = vsel %vm693, %v970, 0
        %1078 = vmatprep.subr.mxu0 0.0
        %1079 = vmatpush1.msra.mxu0 %v989
        %1080 = vmatprep.subr.mxu0 0.0
        %1081 = vmatpush1.msra.mxu0 %v990
        %1082 = vmatprep.subr.mxu0 0.0
        %1083 = vmatpush1.msra.mxu0 0.0
        %1084 = vmatprep.subr.mxu0 0.0
        %1085 = vmatpush1.msra.mxu0 0.0
        %1086 = vmatprep.subr.mxu0 0.0
        %1087 = vmatpush1.msra.mxu0 0.0
        %1088 = vmatprep.subr.mxu0 0.0
        %1089 = vmatpush1.msra.mxu0 0.0
        %1090 = vmatprep.subr.mxu0 0.0
        %1091 = vmatpush1.msra.mxu0 0.0
        %1092 = vmatprep.subr.mxu0 0.0
        %1093 = vmatpush1.msra.mxu0 0.0
        %1094 = vmatprep.subr.mxu0 0.0
        %1095 = vmatpush1.msra.mxu0 0.0
        %1096 = vmatprep.subr.mxu0 0.0
        %1097 = vmatpush1.msra.mxu0 0.0
        %1098 = vmatprep.subr.mxu0 0.0
        %1099 = vmatpush1.msra.mxu0 0.0
        %1100 = vmatprep.subr.mxu0 0.0
        %1101 = vmatpush1.msra.mxu0 0.0
        %1102 = vmatprep.subr.mxu0 0.0
        %1103 = vmatpush1.msra.mxu0 0.0
        %1104 = vmatprep.subr.mxu0 0.0
        %1105 = vmatpush1.msra.mxu0 0.0
        %1106 = vmatprep.subr.mxu0 0.0
        %1107 = vmatpush1.msra.mxu0 0.0
        %1108 = vmatprep.subr.mxu0 0.0
        %1109 = vmatpush1.msra.mxu0 0.0
        %1110 = vmatprep.subr.mxu0 0.0
        %1111 = vmatpush1.msra.mxu0 0.0
        %1112 = vmatprep.subr.mxu0 0.0
        %1113 = vmatpush1.msra.mxu0 0.0
        %1114 = vmatprep.subr.mxu0 0.0
        %1115 = vmatpush1.msra.mxu0 0.0
        %1116 = vmatprep.subr.mxu0 0.0
        %1117 = vmatpush1.msra.mxu0 0.0
        %1118 = vmatprep.subr.mxu0 0.0
        %1119 = vmatpush1.msra.mxu0 0.0
        %1120 = vmatprep.subr.mxu0 0.0
        %1121 = vmatpush1.msra.mxu0 0.0
        %1122 = vmatprep.subr.mxu0 0.0
        %1123 = vmatpush1.msra.mxu0 0.0
        %1124 = vmatprep.subr.mxu0 0.0
        %1125 = vmatpush1.msra.mxu0 0.0
        %1126 = vmatprep.subr.mxu0 0.0
        %1127 = vmatpush1.msra.mxu0 0.0
        %1128 = vmatprep.subr.mxu0 0.0
        %1129 = vmatpush1.msra.mxu0 0.0
        %1130 = vmatprep.subr.mxu0 0.0
        %1131 = vmatpush1.msra.mxu0 0.0
        %1132 = vmatprep.subr.mxu0 0.0
        %1133 = vmatpush1.msra.mxu0 0.0
        %1134 = vmatprep.subr.mxu0 0.0
        %1135 = vmatpush1.msra.mxu0 0.0
        %1136 = vmatprep.subr.mxu0 0.0
        %1137 = vmatpush1.msra.mxu0 0.0
        %1138 = vmatprep.subr.mxu0 0.0
        %1139 = vmatpush1.msra.mxu0 0.0
        %1140 = vmatprep.subr.mxu0 0.0
        %1141 = vmatpush1.msra.mxu0 0.0
        %1142 = vmatprep.mubr.f32.mxu0 0.0
        %1143 = vmatmul.mubr.f32.gmra.mrb[0].mxu0 %v1073
        %v1144 = vpop.f32.mrb[0].mxu0
        %v1145 = vadd.f32 0.0, %v1144
        %v1146 = vpop.f32.mrb[0].mxu0
        %1147 = vmatprep.mubr.f32.mxu0 0.0
        %1148 = vmatmul.mubr.f32.gmra.mrb[0].mxu0 %v1076
        %v1149 = vpop.f32.mrb[0].mxu0
        %v1150 = vadd.f32 0.0, %v1149
        %v1151 = vpop.f32.mrb[0].mxu0
        %1152 = vdwg.mxu0
        %v1154 = vsel %vm693, %v971, 0
        %v1157 = vsel %vm693, %v972, 0
        %1159 = vmatprep.subr.mxu0 0.0
        %1160 = vmatpush1.msra.mxu0 %v989
        %1161 = vmatprep.subr.mxu0 0.0
        %1162 = vmatpush1.msra.mxu0 %v990
        %1163 = vmatprep.subr.mxu0 0.0
        %1164 = vmatpush1.msra.mxu0 0.0
        %1165 = vmatprep.subr.mxu0 0.0
        %1166 = vmatpush1.msra.mxu0 0.0
        %1167 = vmatprep.subr.mxu0 0.0
        %1168 = vmatpush1.msra.mxu0 0.0
        %1169 = vmatprep.subr.mxu0 0.0
        %1170 = vmatpush1.msra.mxu0 0.0
        %1171 = vmatprep.subr.mxu0 0.0
        %1172 = vmatpush1.msra.mxu0 0.0
        %1173 = vmatprep.subr.mxu0 0.0
        %1174 = vmatpush1.msra.mxu0 0.0
        %1175 = vmatprep.subr.mxu0 0.0
        %1176 = vmatpush1.msra.mxu0 0.0
        %1177 = vmatprep.subr.mxu0 0.0
        %1178 = vmatpush1.msra.mxu0 0.0
        %1179 = vmatprep.subr.mxu0 0.0
        %1180 = vmatpush1.msra.mxu0 0.0
        %1181 = vmatprep.subr.mxu0 0.0
        %1182 = vmatpush1.msra.mxu0 0.0
        %1183 = vmatprep.subr.mxu0 0.0
        %1184 = vmatpush1.msra.mxu0 0.0
        %1185 = vmatprep.subr.mxu0 0.0
        %1186 = vmatpush1.msra.mxu0 0.0
        %1187 = vmatprep.subr.mxu0 0.0
        %1188 = vmatpush1.msra.mxu0 0.0
        %1189 = vmatprep.subr.mxu0 0.0
        %1190 = vmatpush1.msra.mxu0 0.0
        %1191 = vmatprep.subr.mxu0 0.0
        %1192 = vmatpush1.msra.mxu0 0.0
        %1193 = vmatprep.subr.mxu0 0.0
        %1194 = vmatpush1.msra.mxu0 0.0
        %1195 = vmatprep.subr.mxu0 0.0
        %1196 = vmatpush1.msra.mxu0 0.0
        %1197 = vmatprep.subr.mxu0 0.0
        %1198 = vmatpush1.msra.mxu0 0.0
        %1199 = vmatprep.subr.mxu0 0.0
        %1200 = vmatpush1.msra.mxu0 0.0
        %1201 = vmatprep.subr.mxu0 0.0
        %1202 = vmatpush1.msra.mxu0 0.0
        %1203 = vmatprep.subr.mxu0 0.0
        %1204 = vmatpush1.msra.mxu0 0.0
        %1205 = vmatprep.subr.mxu0 0.0
        %1206 = vmatpush1.msra.mxu0 0.0
        %1207 = vmatprep.subr.mxu0 0.0
        %1208 = vmatpush1.msra.mxu0 0.0
        %1209 = vmatprep.subr.mxu0 0.0
        %1210 = vmatpush1.msra.mxu0 0.0
        %1211 = vmatprep.subr.mxu0 0.0
        %1212 = vmatpush1.msra.mxu0 0.0
        %1213 = vmatprep.subr.mxu0 0.0
        %1214 = vmatpush1.msra.mxu0 0.0
        %1215 = vmatprep.subr.mxu0 0.0
        %1216 = vmatpush1.msra.mxu0 0.0
        %1217 = vmatprep.subr.mxu0 0.0
        %1218 = vmatpush1.msra.mxu0 0.0
        %1219 = vmatprep.subr.mxu0 0.0
        %1220 = vmatpush1.msra.mxu0 0.0
        %1221 = vmatprep.subr.mxu0 0.0
        %1222 = vmatpush1.msra.mxu0 0.0
        %1223 = vmatprep.mubr.f32.mxu0 0.0
        %1224 = vmatmul.mubr.f32.gmra.mrb[0].mxu0 %v1154
        %v1225 = vpop.f32.mrb[0].mxu0
        %v1226 = vadd.f32 0.0, %v1225
        %v1227 = vpop.f32.mrb[0].mxu0
        %1228 = vmatprep.mubr.f32.mxu0 0.0
        %1229 = vmatmul.mubr.f32.gmra.mrb[0].mxu0 %v1157
        %v1230 = vpop.f32.mrb[0].mxu0
        %v1231 = vadd.f32 0.0, %v1230
        %v1232 = vpop.f32.mrb[0].mxu0
        %1233 = vdwg.mxu0
        %v1235 = vsel %vm693, %v973, 0
        %v1238 = vsel %vm693, %v974, 0
        %1240 = vmatprep.subr.mxu0 0.0
        %1241 = vmatpush1.msra.mxu0 %v989
        %1242 = vmatprep.subr.mxu0 0.0
        %1243 = vmatpush1.msra.mxu0 %v990
        %1244 = vmatprep.subr.mxu0 0.0
        %1245 = vmatpush1.msra.mxu0 0.0
        %1246 = vmatprep.subr.mxu0 0.0
        %1247 = vmatpush1.msra.mxu0 0.0
        %1248 = vmatprep.subr.mxu0 0.0
        %1249 = vmatpush1.msra.mxu0 0.0
        %1250 = vmatprep.subr.mxu0 0.0
        %1251 = vmatpush1.msra.mxu0 0.0
        %1252 = vmatprep.subr.mxu0 0.0
        %1253 = vmatpush1.msra.mxu0 0.0
        %1254 = vmatprep.subr.mxu0 0.0
        %1255 = vmatpush1.msra.mxu0 0.0
        %1256 = vmatprep.subr.mxu0 0.0
        %1257 = vmatpush1.msra.mxu0 0.0
        %1258 = vmatprep.subr.mxu0 0.0
        %1259 = vmatpush1.msra.mxu0 0.0
        %1260 = vmatprep.subr.mxu0 0.0
        %1261 = vmatpush1.msra.mxu0 0.0
        %1262 = vmatprep.subr.mxu0 0.0
        %1263 = vmatpush1.msra.mxu0 0.0
        %1264 = vmatprep.subr.mxu0 0.0
        %1265 = vmatpush1.msra.mxu0 0.0
        %1266 = vmatprep.subr.mxu0 0.0
        %1267 = vmatpush1.msra.mxu0 0.0
        %1268 = vmatprep.subr.mxu0 0.0
        %1269 = vmatpush1.msra.mxu0 0.0
        %1270 = vmatprep.subr.mxu0 0.0
        %1271 = vmatpush1.msra.mxu0 0.0
        %1272 = vmatprep.subr.mxu0 0.0
        %1273 = vmatpush1.msra.mxu0 0.0
        %1274 = vmatprep.subr.mxu0 0.0
        %1275 = vmatpush1.msra.mxu0 0.0
        %1276 = vmatprep.subr.mxu0 0.0
        %1277 = vmatpush1.msra.mxu0 0.0
        %1278 = vmatprep.subr.mxu0 0.0
        %1279 = vmatpush1.msra.mxu0 0.0
        %1280 = vmatprep.subr.mxu0 0.0
        %1281 = vmatpush1.msra.mxu0 0.0
        %1282 = vmatprep.subr.mxu0 0.0
        %1283 = vmatpush1.msra.mxu0 0.0
        %1284 = vmatprep.subr.mxu0 0.0
        %1285 = vmatpush1.msra.mxu0 0.0
        %1286 = vmatprep.subr.mxu0 0.0
        %1287 = vmatpush1.msra.mxu0 0.0
        %1288 = vmatprep.subr.mxu0 0.0
        %1289 = vmatpush1.msra.mxu0 0.0
        %1290 = vmatprep.subr.mxu0 0.0
        %1291 = vmatpush1.msra.mxu0 0.0
        %1292 = vmatprep.subr.mxu0 0.0
        %1293 = vmatpush1.msra.mxu0 0.0
        %1294 = vmatprep.subr.mxu0 0.0
        %1295 = vmatpush1.msra.mxu0 0.0
        %1296 = vmatprep.subr.mxu0 0.0
        %1297 = vmatpush1.msra.mxu0 0.0
        %1298 = vmatprep.subr.mxu0 0.0
        %1299 = vmatpush1.msra.mxu0 0.0
        %1300 = vmatprep.subr.mxu0 0.0
        %1301 = vmatpush1.msra.mxu0 0.0
        %1302 = vmatprep.subr.mxu0 0.0
        %1303 = vmatpush1.msra.mxu0 0.0
        %1304 = vmatprep.mubr.f32.mxu0 0.0
        %1305 = vmatmul.mubr.f32.gmra.mrb[0].mxu0 %v1235
        %v1306 = vpop.f32.mrb[0].mxu0
        %v1307 = vadd.f32 0.0, %v1306
        %v1308 = vpop.f32.mrb[0].mxu0
        %1309 = vmatprep.mubr.f32.mxu0 0.0
        %1310 = vmatmul.mubr.f32.gmra.mrb[0].mxu0 %v1238
        %v1311 = vpop.f32.mrb[0].mxu0
        %v1312 = vadd.f32 0.0, %v1311
        %v1313 = vpop.f32.mrb[0].mxu0
        %1314 = vdwg.mxu0
        %v1316 = vsel %vm693, %v975, 0
        %v1319 = vsel %vm693, %v976, 0
        %1321 = vmatprep.subr.mxu0 0.0
        %1322 = vmatpush1.msra.mxu0 %v989
        %1323 = vmatprep.subr.mxu0 0.0
        %1324 = vmatpush1.msra.mxu0 %v990
        %1325 = vmatprep.subr.mxu0 0.0
        %1326 = vmatpush1.msra.mxu0 0.0
        %1327 = vmatprep.subr.mxu0 0.0
        %1328 = vmatpush1.msra.mxu0 0.0
        %1329 = vmatprep.subr.mxu0 0.0
        %1330 = vmatpush1.msra.mxu0 0.0
        %1331 = vmatprep.subr.mxu0 0.0
        %1332 = vmatpush1.msra.mxu0 0.0
        %1333 = vmatprep.subr.mxu0 0.0
        %1334 = vmatpush1.msra.mxu0 0.0
        %1335 = vmatprep.subr.mxu0 0.0
        %1336 = vmatpush1.msra.mxu0 0.0
        %1337 = vmatprep.subr.mxu0 0.0
        %1338 = vmatpush1.msra.mxu0 0.0
        %1339 = vmatprep.subr.mxu0 0.0
        %1340 = vmatpush1.msra.mxu0 0.0
        %1341 = vmatprep.subr.mxu0 0.0
        %1342 = vmatpush1.msra.mxu0 0.0
        %1343 = vmatprep.subr.mxu0 0.0
        %1344 = vmatpush1.msra.mxu0 0.0
        %1345 = vmatprep.subr.mxu0 0.0
        %1346 = vmatpush1.msra.mxu0 0.0
        %1347 = vmatprep.subr.mxu0 0.0
        %1348 = vmatpush1.msra.mxu0 0.0
        %1349 = vmatprep.subr.mxu0 0.0
        %1350 = vmatpush1.msra.mxu0 0.0
        %1351 = vmatprep.subr.mxu0 0.0
        %1352 = vmatpush1.msra.mxu0 0.0
        %1353 = vmatprep.subr.mxu0 0.0
        %1354 = vmatpush1.msra.mxu0 0.0
        %1355 = vmatprep.subr.mxu0 0.0
        %1356 = vmatpush1.msra.mxu0 0.0
        %1357 = vmatprep.subr.mxu0 0.0
        %1358 = vmatpush1.msra.mxu0 0.0
        %1359 = vmatprep.subr.mxu0 0.0
        %1360 = vmatpush1.msra.mxu0 0.0
        %1361 = vmatprep.subr.mxu0 0.0
        %1362 = vmatpush1.msra.mxu0 0.0
        %1363 = vmatprep.subr.mxu0 0.0
        %1364 = vmatpush1.msra.mxu0 0.0
        %1365 = vmatprep.subr.mxu0 0.0
        %1366 = vmatpush1.msra.mxu0 0.0
        %1367 = vmatprep.subr.mxu0 0.0
        %1368 = vmatpush1.msra.mxu0 0.0
        %1369 = vmatprep.subr.mxu0 0.0
        %1370 = vmatpush1.msra.mxu0 0.0
        %1371 = vmatprep.subr.mxu0 0.0
        %1372 = vmatpush1.msra.mxu0 0.0
        %1373 = vmatprep.subr.mxu0 0.0
        %1374 = vmatpush1.msra.mxu0 0.0
        %1375 = vmatprep.subr.mxu0 0.0
        %1376 = vmatpush1.msra.mxu0 0.0
        %1377 = vmatprep.subr.mxu0 0.0
        %1378 = vmatpush1.msra.mxu0 0.0
        %1379 = vmatprep.subr.mxu0 0.0
        %1380 = vmatpush1.msra.mxu0 0.0
        %1381 = vmatprep.subr.mxu0 0.0
        %1382 = vmatpush1.msra.mxu0 0.0
        %1383 = vmatprep.subr.mxu0 0.0
        %1384 = vmatpush1.msra.mxu0 0.0
        %1385 = vmatprep.mubr.f32.mxu0 0.0
        %1386 = vmatmul.mubr.f32.gmra.mrb[0].mxu0 %v1316
        %v1387 = vpop.f32.mrb[0].mxu0
        %v1388 = vadd.f32 0.0, %v1387
        %v1389 = vpop.f32.mrb[0].mxu0
        %1390 = vmatprep.mubr.f32.mxu0 0.0
        %1391 = vmatmul.mubr.f32.gmra.mrb[0].mxu0 %v1319
        %v1392 = vpop.f32.mrb[0].mxu0
        %v1393 = vadd.f32 0.0, %v1392
        %v1394 = vpop.f32.mrb[0].mxu0
        %1395 = vdwg.mxu0
        %v1397 = vsel %vm693, %v977, 0
        %v1400 = vsel %vm693, %v978, 0
        %1402 = vmatprep.subr.mxu0 0.0
        %1403 = vmatpush1.msra.mxu0 %v989
        %1404 = vmatprep.subr.mxu0 0.0
        %1405 = vmatpush1.msra.mxu0 %v990
        %1406 = vmatprep.subr.mxu0 0.0
        %1407 = vmatpush1.msra.mxu0 0.0
        %1408 = vmatprep.subr.mxu0 0.0
        %1409 = vmatpush1.msra.mxu0 0.0
        %1410 = vmatprep.subr.mxu0 0.0
        %1411 = vmatpush1.msra.mxu0 0.0
        %1412 = vmatprep.subr.mxu0 0.0
        %1413 = vmatpush1.msra.mxu0 0.0
        %1414 = vmatprep.subr.mxu0 0.0
        %1415 = vmatpush1.msra.mxu0 0.0
        %1416 = vmatprep.subr.mxu0 0.0
        %1417 = vmatpush1.msra.mxu0 0.0
        %1418 = vmatprep.subr.mxu0 0.0
        %1419 = vmatpush1.msra.mxu0 0.0
        %1420 = vmatprep.subr.mxu0 0.0
        %1421 = vmatpush1.msra.mxu0 0.0
        %1422 = vmatprep.subr.mxu0 0.0
        %1423 = vmatpush1.msra.mxu0 0.0
        %1424 = vmatprep.subr.mxu0 0.0
        %1425 = vmatpush1.msra.mxu0 0.0
        %1426 = vmatprep.subr.mxu0 0.0
        %1427 = vmatpush1.msra.mxu0 0.0
        %1428 = vmatprep.subr.mxu0 0.0
        %1429 = vmatpush1.msra.mxu0 0.0
        %1430 = vmatprep.subr.mxu0 0.0
        %1431 = vmatpush1.msra.mxu0 0.0
        %1432 = vmatprep.subr.mxu0 0.0
        %1433 = vmatpush1.msra.mxu0 0.0
        %1434 = vmatprep.subr.mxu0 0.0
        %1435 = vmatpush1.msra.mxu0 0.0
        %1436 = vmatprep.subr.mxu0 0.0
        %1437 = vmatpush1.msra.mxu0 0.0
        %1438 = vmatprep.subr.mxu0 0.0
        %1439 = vmatpush1.msra.mxu0 0.0
        %1440 = vmatprep.subr.mxu0 0.0
        %1441 = vmatpush1.msra.mxu0 0.0
        %1442 = vmatprep.subr.mxu0 0.0
        %1443 = vmatpush1.msra.mxu0 0.0
        %1444 = vmatprep.subr.mxu0 0.0
        %1445 = vmatpush1.msra.mxu0 0.0
        %1446 = vmatprep.subr.mxu0 0.0
        %1447 = vmatpush1.msra.mxu0 0.0
        %1448 = vmatprep.subr.mxu0 0.0
        %1449 = vmatpush1.msra.mxu0 0.0
        %1450 = vmatprep.subr.mxu0 0.0
        %1451 = vmatpush1.msra.mxu0 0.0
        %1452 = vmatprep.subr.mxu0 0.0
        %1453 = vmatpush1.msra.mxu0 0.0
        %1454 = vmatprep.subr.mxu0 0.0
        %1455 = vmatpush1.msra.mxu0 0.0
        %1456 = vmatprep.subr.mxu0 0.0
        %1457 = vmatpush1.msra.mxu0 0.0
        %1458 = vmatprep.subr.mxu0 0.0
        %1459 = vmatpush1.msra.mxu0 0.0
        %1460 = vmatprep.subr.mxu0 0.0
        %1461 = vmatpush1.msra.mxu0 0.0
        %1462 = vmatprep.subr.mxu0 0.0
        %1463 = vmatpush1.msra.mxu0 0.0
        %1464 = vmatprep.subr.mxu0 0.0
        %1465 = vmatpush1.msra.mxu0 0.0
        %1466 = vmatprep.mubr.f32.mxu0 0.0
        %1467 = vmatmul.mubr.f32.gmra.mrb[0].mxu0 %v1397
        %v1468 = vpop.f32.mrb[0].mxu0
        %v1469 = vadd.f32 0.0, %v1468
        %v1470 = vpop.f32.mrb[0].mxu0
        %1471 = vmatprep.mubr.f32.mxu0 0.0
        %1472 = vmatmul.mubr.f32.gmra.mrb[0].mxu0 %v1400
        %v1473 = vpop.f32.mrb[0].mxu0
        %v1474 = vadd.f32 0.0, %v1473
        %v1475 = vpop.f32.mrb[0].mxu0
        %1476 = vdwg.mxu0
        %v1478 = vsel %vm693, %v979, 0
        %v1481 = vsel %vm693, %v980, 0
        %1483 = vmatprep.subr.mxu0 0.0
        %1484 = vmatpush1.msra.mxu0 %v989
        %1485 = vmatprep.subr.mxu0 0.0
        %1486 = vmatpush1.msra.mxu0 %v990
        %1487 = vmatprep.subr.mxu0 0.0
        %1488 = vmatpush1.msra.mxu0 0.0
        %1489 = vmatprep.subr.mxu0 0.0
        %1490 = vmatpush1.msra.mxu0 0.0
        %1491 = vmatprep.subr.mxu0 0.0
        %1492 = vmatpush1.msra.mxu0 0.0
        %1493 = vmatprep.subr.mxu0 0.0
        %1494 = vmatpush1.msra.mxu0 0.0
        %1495 = vmatprep.subr.mxu0 0.0
        %1496 = vmatpush1.msra.mxu0 0.0
        %1497 = vmatprep.subr.mxu0 0.0
        %1498 = vmatpush1.msra.mxu0 0.0
        %1499 = vmatprep.subr.mxu0 0.0
        %1500 = vmatpush1.msra.mxu0 0.0
        %1501 = vmatprep.subr.mxu0 0.0
        %1502 = vmatpush1.msra.mxu0 0.0
        %1503 = vmatprep.subr.mxu0 0.0
        %1504 = vmatpush1.msra.mxu0 0.0
        %1505 = vmatprep.subr.mxu0 0.0
        %1506 = vmatpush1.msra.mxu0 0.0
        %1507 = vmatprep.subr.mxu0 0.0
        %1508 = vmatpush1.msra.mxu0 0.0
        %1509 = vmatprep.subr.mxu0 0.0
        %1510 = vmatpush1.msra.mxu0 0.0
        %1511 = vmatprep.subr.mxu0 0.0
        %1512 = vmatpush1.msra.mxu0 0.0
        %1513 = vmatprep.subr.mxu0 0.0
        %1514 = vmatpush1.msra.mxu0 0.0
        %1515 = vmatprep.subr.mxu0 0.0
        %1516 = vmatpush1.msra.mxu0 0.0
        %1517 = vmatprep.subr.mxu0 0.0
        %1518 = vmatpush1.msra.mxu0 0.0
        %1519 = vmatprep.subr.mxu0 0.0
        %1520 = vmatpush1.msra.mxu0 0.0
        %1521 = vmatprep.subr.mxu0 0.0
        %1522 = vmatpush1.msra.mxu0 0.0
        %1523 = vmatprep.subr.mxu0 0.0
        %1524 = vmatpush1.msra.mxu0 0.0
        %1525 = vmatprep.subr.mxu0 0.0
        %1526 = vmatpush1.msra.mxu0 0.0
        %1527 = vmatprep.subr.mxu0 0.0
        %1528 = vmatpush1.msra.mxu0 0.0
        %1529 = vmatprep.subr.mxu0 0.0
        %1530 = vmatpush1.msra.mxu0 0.0
        %1531 = vmatprep.subr.mxu0 0.0
        %1532 = vmatpush1.msra.mxu0 0.0
        %1533 = vmatprep.subr.mxu0 0.0
        %1534 = vmatpush1.msra.mxu0 0.0
        %1535 = vmatprep.subr.mxu0 0.0
        %1536 = vmatpush1.msra.mxu0 0.0
        %1537 = vmatprep.subr.mxu0 0.0
        %1538 = vmatpush1.msra.mxu0 0.0
        %1539 = vmatprep.subr.mxu0 0.0
        %1540 = vmatpush1.msra.mxu0 0.0
        %1541 = vmatprep.subr.mxu0 0.0
        %1542 = vmatpush1.msra.mxu0 0.0
        %1543 = vmatprep.subr.mxu0 0.0
        %1544 = vmatpush1.msra.mxu0 0.0
        %1545 = vmatprep.subr.mxu0 0.0
        %1546 = vmatpush1.msra.mxu0 0.0
        %1547 = vmatprep.mubr.f32.mxu0 0.0
        %1548 = vmatmul.mubr.f32.gmra.mrb[0].mxu0 %v1478
        %v1549 = vpop.f32.mrb[0].mxu0
        %v1550 = vadd.f32 0.0, %v1549
        %v1551 = vpop.f32.mrb[0].mxu0
        %1552 = vmatprep.mubr.f32.mxu0 0.0
        %1553 = vmatmul.mubr.f32.gmra.mrb[0].mxu0 %v1481
        %v1554 = vpop.f32.mrb[0].mxu0
        %v1555 = vadd.f32 0.0, %v1554
        %v1556 = vpop.f32.mrb[0].mxu0
        %1557 = vdwg.mxu0
        %v1559 = vsel %vm693, %v981, 0
        %v1562 = vsel %vm693, %v982, 0
        %1564 = vmatprep.subr.mxu0 0.0
        %1565 = vmatpush1.msra.mxu0 %v989
        %1566 = vmatprep.subr.mxu0 0.0
        %1567 = vmatpush1.msra.mxu0 %v990
        %1568 = vmatprep.subr.mxu0 0.0
        %1569 = vmatpush1.msra.mxu0 0.0
        %1570 = vmatprep.subr.mxu0 0.0
        %1571 = vmatpush1.msra.mxu0 0.0
        %1572 = vmatprep.subr.mxu0 0.0
        %1573 = vmatpush1.msra.mxu0 0.0
        %1574 = vmatprep.subr.mxu0 0.0
        %1575 = vmatpush1.msra.mxu0 0.0
        %1576 = vmatprep.subr.mxu0 0.0
        %1577 = vmatpush1.msra.mxu0 0.0
        %1578 = vmatprep.subr.mxu0 0.0
        %1579 = vmatpush1.msra.mxu0 0.0
        %1580 = vmatprep.subr.mxu0 0.0
        %1581 = vmatpush1.msra.mxu0 0.0
        %1582 = vmatprep.subr.mxu0 0.0
        %1583 = vmatpush1.msra.mxu0 0.0
        %1584 = vmatprep.subr.mxu0 0.0
        %1585 = vmatpush1.msra.mxu0 0.0
        %1586 = vmatprep.subr.mxu0 0.0
        %1587 = vmatpush1.msra.mxu0 0.0
        %1588 = vmatprep.subr.mxu0 0.0
        %1589 = vmatpush1.msra.mxu0 0.0
        %1590 = vmatprep.subr.mxu0 0.0
        %1591 = vmatpush1.msra.mxu0 0.0
        %1592 = vmatprep.subr.mxu0 0.0
        %1593 = vmatpush1.msra.mxu0 0.0
        %1594 = vmatprep.subr.mxu0 0.0
        %1595 = vmatpush1.msra.mxu0 0.0
        %1596 = vmatprep.subr.mxu0 0.0
        %1597 = vmatpush1.msra.mxu0 0.0
        %1598 = vmatprep.subr.mxu0 0.0
        %1599 = vmatpush1.msra.mxu0 0.0
        %1600 = vmatprep.subr.mxu0 0.0
        %1601 = vmatpush1.msra.mxu0 0.0
        %1602 = vmatprep.subr.mxu0 0.0
        %1603 = vmatpush1.msra.mxu0 0.0
        %1604 = vmatprep.subr.mxu0 0.0
        %1605 = vmatpush1.msra.mxu0 0.0
        %1606 = vmatprep.subr.mxu0 0.0
        %1607 = vmatpush1.msra.mxu0 0.0
        %1608 = vmatprep.subr.mxu0 0.0
        %1609 = vmatpush1.msra.mxu0 0.0
        %1610 = vmatprep.subr.mxu0 0.0
        %1611 = vmatpush1.msra.mxu0 0.0
        %1612 = vmatprep.subr.mxu0 0.0
        %1613 = vmatpush1.msra.mxu0 0.0
        %1614 = vmatprep.subr.mxu0 0.0
        %1615 = vmatpush1.msra.mxu0 0.0
        %1616 = vmatprep.subr.mxu0 0.0
        %1617 = vmatpush1.msra.mxu0 0.0
        %1618 = vmatprep.subr.mxu0 0.0
        %1619 = vmatpush1.msra.mxu0 0.0
        %1620 = vmatprep.subr.mxu0 0.0
        %1621 = vmatpush1.msra.mxu0 0.0
        %1622 = vmatprep.subr.mxu0 0.0
        %1623 = vmatpush1.msra.mxu0 0.0
        %1624 = vmatprep.subr.mxu0 0.0
        %1625 = vmatpush1.msra.mxu0 0.0
        %1626 = vmatprep.subr.mxu0 0.0
        %1627 = vmatpush1.msra.mxu0 0.0
        %1628 = vmatprep.mubr.f32.mxu0 0.0
        %1629 = vmatmul.mubr.f32.gmra.mrb[0].mxu0 %v1559
        %v1630 = vpop.f32.mrb[0].mxu0
        %v1631 = vadd.f32 0.0, %v1630
        %v1632 = vpop.f32.mrb[0].mxu0
        %1633 = vmatprep.mubr.f32.mxu0 0.0
        %1634 = vmatmul.mubr.f32.gmra.mrb[0].mxu0 %v1562
        %v1635 = vpop.f32.mrb[0].mxu0
        %v1636 = vadd.f32 0.0, %v1635
        %v1637 = vpop.f32.mrb[0].mxu0
        %1638 = vdwg.mxu0
        %v1640 = vsel %vm693, %v1064, 0
        %v1643 = vsel %vm693, %v1069, 0
        %1645 = vmatprep.subr.mxu0 0.0
        %1646 = vmatpush1.xpose.msra.mxu0 %v992
        %1647 = vmatprep.subr.mxu0 0.0
        %1648 = vmatpush1.xpose.msra.mxu0 %v995
        %1649 = vmatprep.subr.mxu0 0.0
        %1650 = vmatpush1.xpose.msra.mxu0 0.0
        %1651 = vmatprep.subr.mxu0 0.0
        %1652 = vmatpush1.xpose.msra.mxu0 0.0
        %1653 = vmatprep.subr.mxu0 0.0
        %1654 = vmatpush1.xpose.msra.mxu0 0.0
        %1655 = vmatprep.subr.mxu0 0.0
        %1656 = vmatpush1.xpose.msra.mxu0 0.0
        %1657 = vmatprep.subr.mxu0 0.0
        %1658 = vmatpush1.xpose.msra.mxu0 0.0
        %1659 = vmatprep.subr.mxu0 0.0
        %1660 = vmatpush1.xpose.msra.mxu0 0.0
        %1661 = vmatprep.subr.mxu0 0.0
        %1662 = vmatpush1.xpose.msra.mxu0 0.0
        %1663 = vmatprep.subr.mxu0 0.0
        %1664 = vmatpush1.xpose.msra.mxu0 0.0
        %1665 = vmatprep.subr.mxu0 0.0
        %1666 = vmatpush1.xpose.msra.mxu0 0.0
        %1667 = vmatprep.subr.mxu0 0.0
        %1668 = vmatpush1.xpose.msra.mxu0 0.0
        %1669 = vmatprep.subr.mxu0 0.0
        %1670 = vmatpush1.xpose.msra.mxu0 0.0
        %1671 = vmatprep.subr.mxu0 0.0
        %1672 = vmatpush1.xpose.msra.mxu0 0.0
        %1673 = vmatprep.subr.mxu0 0.0
        %1674 = vmatpush1.xpose.msra.mxu0 0.0
        %1675 = vmatprep.subr.mxu0 0.0
        %1676 = vmatpush1.xpose.msra.mxu0 0.0
        %1677 = vmatprep.subr.mxu0 0.0
        %1678 = vmatpush1.xpose.msra.mxu0 0.0
        %1679 = vmatprep.subr.mxu0 0.0
        %1680 = vmatpush1.xpose.msra.mxu0 0.0
        %1681 = vmatprep.subr.mxu0 0.0
        %1682 = vmatpush1.xpose.msra.mxu0 0.0
        %1683 = vmatprep.subr.mxu0 0.0
        %1684 = vmatpush1.xpose.msra.mxu0 0.0
        %1685 = vmatprep.subr.mxu0 0.0
        %1686 = vmatpush1.xpose.msra.mxu0 0.0
        %1687 = vmatprep.subr.mxu0 0.0
        %1688 = vmatpush1.xpose.msra.mxu0 0.0
        %1689 = vmatprep.subr.mxu0 0.0
        %1690 = vmatpush1.xpose.msra.mxu0 0.0
        %1691 = vmatprep.subr.mxu0 0.0
        %1692 = vmatpush1.xpose.msra.mxu0 0.0
        %1693 = vmatprep.subr.mxu0 0.0
        %1694 = vmatpush1.xpose.msra.mxu0 0.0
        %1695 = vmatprep.subr.mxu0 0.0
        %1696 = vmatpush1.xpose.msra.mxu0 0.0
        %1697 = vmatprep.subr.mxu0 0.0
        %1698 = vmatpush1.xpose.msra.mxu0 0.0
        %1699 = vmatprep.subr.mxu0 0.0
        %1700 = vmatpush1.xpose.msra.mxu0 0.0
        %1701 = vmatprep.subr.mxu0 0.0
        %1702 = vmatpush1.xpose.msra.mxu0 0.0
        %1703 = vmatprep.subr.mxu0 0.0
        %1704 = vmatpush1.xpose.msra.mxu0 0.0
        %1705 = vmatprep.subr.mxu0 0.0
        %1706 = vmatpush1.xpose.msra.mxu0 0.0
        %1707 = vmatprep.subr.mxu0 0.0
        %1708 = vmatpush1.xpose.msra.mxu0 0.0
        %1709 = vmatprep.mubr.f32.mxu0 0.0
        %1710 = vmatmul.mubr.f32.gmra.mrb[0].mxu0 %v1640
        %v1711 = vpop.f32.mrb[0].mxu0
        %v1712 = vadd.f32 0.0, %v1711
        %v1713 = vpop.f32.mrb[0].mxu0
        %1714 = vmatprep.mubr.f32.mxu0 0.0
        %1715 = vmatmul.mubr.f32.gmra.mrb[0].mxu0 %v1643
        %v1716 = vpop.f32.mrb[0].mxu0
        %v1717 = vadd.f32 0.0, %v1716
        %v1718 = vpop.f32.mrb[0].mxu0
        %1719 = vdwg.mxu0
        %v1721 = vsel %vm693, %v1145, 0
        %v1724 = vsel %vm693, %v1150, 0
        %1726 = vmatprep.subr.mxu0 0.0
        %1727 = vmatpush1.xpose.msra.mxu0 %v1073
        %1728 = vmatprep.subr.mxu0 0.0
        %1729 = vmatpush1.xpose.msra.mxu0 %v1076
        %1730 = vmatprep.subr.mxu0 0.0
        %1731 = vmatpush1.xpose.msra.mxu0 0.0
        %1732 = vmatprep.subr.mxu0 0.0
        %1733 = vmatpush1.xpose.msra.mxu0 0.0
        %1734 = vmatprep.subr.mxu0 0.0
        %1735 = vmatpush1.xpose.msra.mxu0 0.0
        %1736 = vmatprep.subr.mxu0 0.0
        %1737 = vmatpush1.xpose.msra.mxu0 0.0
        %1738 = vmatprep.subr.mxu0 0.0
        %1739 = vmatpush1.xpose.msra.mxu0 0.0
        %1740 = vmatprep.subr.mxu0 0.0
        %1741 = vmatpush1.xpose.msra.mxu0 0.0
        %1742 = vmatprep.subr.mxu0 0.0
        %1743 = vmatpush1.xpose.msra.mxu0 0.0
        %1744 = vmatprep.subr.mxu0 0.0
        %1745 = vmatpush1.xpose.msra.mxu0 0.0
        %1746 = vmatprep.subr.mxu0 0.0
        %1747 = vmatpush1.xpose.msra.mxu0 0.0
        %1748 = vmatprep.subr.mxu0 0.0
        %1749 = vmatpush1.xpose.msra.mxu0 0.0
        %1750 = vmatprep.subr.mxu0 0.0
        %1751 = vmatpush1.xpose.msra.mxu0 0.0
        %1752 = vmatprep.subr.mxu0 0.0
        %1753 = vmatpush1.xpose.msra.mxu0 0.0
        %1754 = vmatprep.subr.mxu0 0.0
        %1755 = vmatpush1.xpose.msra.mxu0 0.0
        %1756 = vmatprep.subr.mxu0 0.0
        %1757 = vmatpush1.xpose.msra.mxu0 0.0
        %1758 = vmatprep.subr.mxu0 0.0
        %1759 = vmatpush1.xpose.msra.mxu0 0.0
        %1760 = vmatprep.subr.mxu0 0.0
        %1761 = vmatpush1.xpose.msra.mxu0 0.0
        %1762 = vmatprep.subr.mxu0 0.0
        %1763 = vmatpush1.xpose.msra.mxu0 0.0
        %1764 = vmatprep.subr.mxu0 0.0
        %1765 = vmatpush1.xpose.msra.mxu0 0.0
        %1766 = vmatprep.subr.mxu0 0.0
        %1767 = vmatpush1.xpose.msra.mxu0 0.0
        %1768 = vmatprep.subr.mxu0 0.0
        %1769 = vmatpush1.xpose.msra.mxu0 0.0
        %1770 = vmatprep.subr.mxu0 0.0
        %1771 = vmatpush1.xpose.msra.mxu0 0.0
        %1772 = vmatprep.subr.mxu0 0.0
        %1773 = vmatpush1.xpose.msra.mxu0 0.0
        %1774 = vmatprep.subr.mxu0 0.0
        %1775 = vmatpush1.xpose.msra.mxu0 0.0
        %1776 = vmatprep.subr.mxu0 0.0
        %1777 = vmatpush1.xpose.msra.mxu0 0.0
        %1778 = vmatprep.subr.mxu0 0.0
        %1779 = vmatpush1.xpose.msra.mxu0 0.0
        %1780 = vmatprep.subr.mxu0 0.0
        %1781 = vmatpush1.xpose.msra.mxu0 0.0
        %1782 = vmatprep.subr.mxu0 0.0
        %1783 = vmatpush1.xpose.msra.mxu0 0.0
        %1784 = vmatprep.subr.mxu0 0.0
        %1785 = vmatpush1.xpose.msra.mxu0 0.0
        %1786 = vmatprep.subr.mxu0 0.0
        %1787 = vmatpush1.xpose.msra.mxu0 0.0
        %1788 = vmatprep.subr.mxu0 0.0
        %1789 = vmatpush1.xpose.msra.mxu0 0.0
        %1790 = vmatprep.mubr.f32.mxu0 0.0
        %1791 = vmatmul.mubr.f32.gmra.mrb[0].mxu0 %v1721
        %v1792 = vpop.f32.mrb[0].mxu0
        %v1793 = vadd.f32 0.0, %v1792
        %v1794 = vpop.f32.mrb[0].mxu0
        %1795 = vmatprep.mubr.f32.mxu0 0.0
        %1796 = vmatmul.mubr.f32.gmra.mrb[0].mxu0 %v1724
        %v1797 = vpop.f32.mrb[0].mxu0
        %v1798 = vadd.f32 0.0, %v1797
        %v1799 = vpop.f32.mrb[0].mxu0
        %1800 = vdwg.mxu0
        %v1802 = vsel %vm693, %v1226, 0
        %v1805 = vsel %vm693, %v1231, 0
        %1807 = vmatprep.subr.mxu0 0.0
        %1808 = vmatpush1.xpose.msra.mxu0 %v1154
        %1809 = vmatprep.subr.mxu0 0.0
        %1810 = vmatpush1.xpose.msra.mxu0 %v1157
        %1811 = vmatprep.subr.mxu0 0.0
        %1812 = vmatpush1.xpose.msra.mxu0 0.0
        %1813 = vmatprep.subr.mxu0 0.0
        %1814 = vmatpush1.xpose.msra.mxu0 0.0
        %1815 = vmatprep.subr.mxu0 0.0
        %1816 = vmatpush1.xpose.msra.mxu0 0.0
        %1817 = vmatprep.subr.mxu0 0.0
        %1818 = vmatpush1.xpose.msra.mxu0 0.0
        %1819 = vmatprep.subr.mxu0 0.0
        %1820 = vmatpush1.xpose.msra.mxu0 0.0
        %1821 = vmatprep.subr.mxu0 0.0
        %1822 = vmatpush1.xpose.msra.mxu0 0.0
        %1823 = vmatprep.subr.mxu0 0.0
        %1824 = vmatpush1.xpose.msra.mxu0 0.0
        %1825 = vmatprep.subr.mxu0 0.0
        %1826 = vmatpush1.xpose.msra.mxu0 0.0
        %1827 = vmatprep.subr.mxu0 0.0
        %1828 = vmatpush1.xpose.msra.mxu0 0.0
        %1829 = vmatprep.subr.mxu0 0.0
        %1830 = vmatpush1.xpose.msra.mxu0 0.0
        %1831 = vmatprep.subr.mxu0 0.0
        %1832 = vmatpush1.xpose.msra.mxu0 0.0
        %1833 = vmatprep.subr.mxu0 0.0
        %1834 = vmatpush1.xpose.msra.mxu0 0.0
        %1835 = vmatprep.subr.mxu0 0.0
        %1836 = vmatpush1.xpose.msra.mxu0 0.0
        %1837 = vmatprep.subr.mxu0 0.0
        %1838 = vmatpush1.xpose.msra.mxu0 0.0
        %1839 = vmatprep.subr.mxu0 0.0
        %1840 = vmatpush1.xpose.msra.mxu0 0.0
        %1841 = vmatprep.subr.mxu0 0.0
        %1842 = vmatpush1.xpose.msra.mxu0 0.0
        %1843 = vmatprep.subr.mxu0 0.0
        %1844 = vmatpush1.xpose.msra.mxu0 0.0
        %1845 = vmatprep.subr.mxu0 0.0
        %1846 = vmatpush1.xpose.msra.mxu0 0.0
        %1847 = vmatprep.subr.mxu0 0.0
        %1848 = vmatpush1.xpose.msra.mxu0 0.0
        %1849 = vmatprep.subr.mxu0 0.0
        %1850 = vmatpush1.xpose.msra.mxu0 0.0
        %1851 = vmatprep.subr.mxu0 0.0
        %1852 = vmatpush1.xpose.msra.mxu0 0.0
        %1853 = vmatprep.subr.mxu0 0.0
        %1854 = vmatpush1.xpose.msra.mxu0 0.0
        %1855 = vmatprep.subr.mxu0 0.0
        %1856 = vmatpush1.xpose.msra.mxu0 0.0
        %1857 = vmatprep.subr.mxu0 0.0
        %1858 = vmatpush1.xpose.msra.mxu0 0.0
        %1859 = vmatprep.subr.mxu0 0.0
        %1860 = vmatpush1.xpose.msra.mxu0 0.0
        %1861 = vmatprep.subr.mxu0 0.0
        %1862 = vmatpush1.xpose.msra.mxu0 0.0
        %1863 = vmatprep.subr.mxu0 0.0
        %1864 = vmatpush1.xpose.msra.mxu0 0.0
        %1865 = vmatprep.subr.mxu0 0.0
        %1866 = vmatpush1.xpose.msra.mxu0 0.0
        %1867 = vmatprep.subr.mxu0 0.0
        %1868 = vmatpush1.xpose.msra.mxu0 0.0
        %1869 = vmatprep.subr.mxu0 0.0
        %1870 = vmatpush1.xpose.msra.mxu0 0.0
        %1871 = vmatprep.mubr.f32.mxu0 0.0
        %1872 = vmatmul.mubr.f32.gmra.mrb[0].mxu0 %v1802
        %v1873 = vpop.f32.mrb[0].mxu0
        %v1874 = vadd.f32 0.0, %v1873
        %v1875 = vpop.f32.mrb[0].mxu0
        %1876 = vmatprep.mubr.f32.mxu0 0.0
        %1877 = vmatmul.mubr.f32.gmra.mrb[0].mxu0 %v1805
        %v1878 = vpop.f32.mrb[0].mxu0
        %v1879 = vadd.f32 0.0, %v1878
        %v1880 = vpop.f32.mrb[0].mxu0
        %1881 = vdwg.mxu0
        %v1883 = vsel %vm693, %v1307, 0
        %v1886 = vsel %vm693, %v1312, 0
        %1888 = vmatprep.subr.mxu0 0.0
        %1889 = vmatpush1.xpose.msra.mxu0 %v1235
        %1890 = vmatprep.subr.mxu0 0.0
        %1891 = vmatpush1.xpose.msra.mxu0 %v1238
        %1892 = vmatprep.subr.mxu0 0.0
        %1893 = vmatpush1.xpose.msra.mxu0 0.0
        %1894 = vmatprep.subr.mxu0 0.0
        %1895 = vmatpush1.xpose.msra.mxu0 0.0
        %1896 = vmatprep.subr.mxu0 0.0
        %1897 = vmatpush1.xpose.msra.mxu0 0.0
        %1898 = vmatprep.subr.mxu0 0.0
        %1899 = vmatpush1.xpose.msra.mxu0 0.0
        %1900 = vmatprep.subr.mxu0 0.0
        %1901 = vmatpush1.xpose.msra.mxu0 0.0
        %1902 = vmatprep.subr.mxu0 0.0
        %1903 = vmatpush1.xpose.msra.mxu0 0.0
        %1904 = vmatprep.subr.mxu0 0.0
        %1905 = vmatpush1.xpose.msra.mxu0 0.0
        %1906 = vmatprep.subr.mxu0 0.0
        %1907 = vmatpush1.xpose.msra.mxu0 0.0
        %1908 = vmatprep.subr.mxu0 0.0
        %1909 = vmatpush1.xpose.msra.mxu0 0.0
        %1910 = vmatprep.subr.mxu0 0.0
        %1911 = vmatpush1.xpose.msra.mxu0 0.0
        %1912 = vmatprep.subr.mxu0 0.0
        %1913 = vmatpush1.xpose.msra.mxu0 0.0
        %1914 = vmatprep.subr.mxu0 0.0
        %1915 = vmatpush1.xpose.msra.mxu0 0.0
        %1916 = vmatprep.subr.mxu0 0.0
        %1917 = vmatpush1.xpose.msra.mxu0 0.0
        %1918 = vmatprep.subr.mxu0 0.0
        %1919 = vmatpush1.xpose.msra.mxu0 0.0
        %1920 = vmatprep.subr.mxu0 0.0
        %1921 = vmatpush1.xpose.msra.mxu0 0.0
        %1922 = vmatprep.subr.mxu0 0.0
        %1923 = vmatpush1.xpose.msra.mxu0 0.0
        %1924 = vmatprep.subr.mxu0 0.0
        %1925 = vmatpush1.xpose.msra.mxu0 0.0
        %1926 = vmatprep.subr.mxu0 0.0
        %1927 = vmatpush1.xpose.msra.mxu0 0.0
        %1928 = vmatprep.subr.mxu0 0.0
        %1929 = vmatpush1.xpose.msra.mxu0 0.0
        %1930 = vmatprep.subr.mxu0 0.0
        %1931 = vmatpush1.xpose.msra.mxu0 0.0
        %1932 = vmatprep.subr.mxu0 0.0
        %1933 = vmatpush1.xpose.msra.mxu0 0.0
        %1934 = vmatprep.subr.mxu0 0.0
        %1935 = vmatpush1.xpose.msra.mxu0 0.0
        %1936 = vmatprep.subr.mxu0 0.0
        %1937 = vmatpush1.xpose.msra.mxu0 0.0
        %1938 = vmatprep.subr.mxu0 0.0
        %1939 = vmatpush1.xpose.msra.mxu0 0.0
        %1940 = vmatprep.subr.mxu0 0.0
        %1941 = vmatpush1.xpose.msra.mxu0 0.0
        %1942 = vmatprep.subr.mxu0 0.0
        %1943 = vmatpush1.xpose.msra.mxu0 0.0
        %1944 = vmatprep.subr.mxu0 0.0
        %1945 = vmatpush1.xpose.msra.mxu0 0.0
        %1946 = vmatprep.subr.mxu0 0.0
        %1947 = vmatpush1.xpose.msra.mxu0 0.0
        %1948 = vmatprep.subr.mxu0 0.0
        %1949 = vmatpush1.xpose.msra.mxu0 0.0
        %1950 = vmatprep.subr.mxu0 0.0
        %1951 = vmatpush1.xpose.msra.mxu0 0.0
        %1952 = vmatprep.mubr.f32.mxu0 0.0
        %1953 = vmatmul.mubr.f32.gmra.mrb[0].mxu0 %v1883
        %v1954 = vpop.f32.mrb[0].mxu0
        %v1955 = vadd.f32 0.0, %v1954
        %v1956 = vpop.f32.mrb[0].mxu0
        %1957 = vmatprep.mubr.f32.mxu0 0.0
        %1958 = vmatmul.mubr.f32.gmra.mrb[0].mxu0 %v1886
        %v1959 = vpop.f32.mrb[0].mxu0
        %v1960 = vadd.f32 0.0, %v1959
        %v1961 = vpop.f32.mrb[0].mxu0
        %1962 = vdwg.mxu0
        %v1964 = vsel %vm693, %v1388, 0
        %v1967 = vsel %vm693, %v1393, 0
        %1969 = vmatprep.subr.mxu0 0.0
        %1970 = vmatpush1.xpose.msra.mxu0 %v1316
        %1971 = vmatprep.subr.mxu0 0.0
        %1972 = vmatpush1.xpose.msra.mxu0 %v1319
        %1973 = vmatprep.subr.mxu0 0.0
        %1974 = vmatpush1.xpose.msra.mxu0 0.0
        %1975 = vmatprep.subr.mxu0 0.0
        %1976 = vmatpush1.xpose.msra.mxu0 0.0
        %1977 = vmatprep.subr.mxu0 0.0
        %1978 = vmatpush1.xpose.msra.mxu0 0.0
        %1979 = vmatprep.subr.mxu0 0.0
        %1980 = vmatpush1.xpose.msra.mxu0 0.0
        %1981 = vmatprep.subr.mxu0 0.0
        %1982 = vmatpush1.xpose.msra.mxu0 0.0
        %1983 = vmatprep.subr.mxu0 0.0
        %1984 = vmatpush1.xpose.msra.mxu0 0.0
        %1985 = vmatprep.subr.mxu0 0.0
        %1986 = vmatpush1.xpose.msra.mxu0 0.0
        %1987 = vmatprep.subr.mxu0 0.0
        %1988 = vmatpush1.xpose.msra.mxu0 0.0
        %1989 = vmatprep.subr.mxu0 0.0
        %1990 = vmatpush1.xpose.msra.mxu0 0.0
        %1991 = vmatprep.subr.mxu0 0.0
        %1992 = vmatpush1.xpose.msra.mxu0 0.0
        %1993 = vmatprep.subr.mxu0 0.0
        %1994 = vmatpush1.xpose.msra.mxu0 0.0
        %1995 = vmatprep.subr.mxu0 0.0
        %1996 = vmatpush1.xpose.msra.mxu0 0.0
        %1997 = vmatprep.subr.mxu0 0.0
        %1998 = vmatpush1.xpose.msra.mxu0 0.0
        %1999 = vmatprep.subr.mxu0 0.0
        %2000 = vmatpush1.xpose.msra.mxu0 0.0
        %2001 = vmatprep.subr.mxu0 0.0
        %2002 = vmatpush1.xpose.msra.mxu0 0.0
        %2003 = vmatprep.subr.mxu0 0.0
        %2004 = vmatpush1.xpose.msra.mxu0 0.0
        %2005 = vmatprep.subr.mxu0 0.0
        %2006 = vmatpush1.xpose.msra.mxu0 0.0
        %2007 = vmatprep.subr.mxu0 0.0
        %2008 = vmatpush1.xpose.msra.mxu0 0.0
        %2009 = vmatprep.subr.mxu0 0.0
        %2010 = vmatpush1.xpose.msra.mxu0 0.0
        %2011 = vmatprep.subr.mxu0 0.0
        %2012 = vmatpush1.xpose.msra.mxu0 0.0
        %2013 = vmatprep.subr.mxu0 0.0
        %2014 = vmatpush1.xpose.msra.mxu0 0.0
        %2015 = vmatprep.subr.mxu0 0.0
        %2016 = vmatpush1.xpose.msra.mxu0 0.0
        %2017 = vmatprep.subr.mxu0 0.0
        %2018 = vmatpush1.xpose.msra.mxu0 0.0
        %2019 = vmatprep.subr.mxu0 0.0
        %2020 = vmatpush1.xpose.msra.mxu0 0.0
        %2021 = vmatprep.subr.mxu0 0.0
        %2022 = vmatpush1.xpose.msra.mxu0 0.0
        %2023 = vmatprep.subr.mxu0 0.0
        %2024 = vmatpush1.xpose.msra.mxu0 0.0
        %2025 = vmatprep.subr.mxu0 0.0
        %2026 = vmatpush1.xpose.msra.mxu0 0.0
        %2027 = vmatprep.subr.mxu0 0.0
        %2028 = vmatpush1.xpose.msra.mxu0 0.0
        %2029 = vmatprep.subr.mxu0 0.0
        %2030 = vmatpush1.xpose.msra.mxu0 0.0
        %2031 = vmatprep.subr.mxu0 0.0
        %2032 = vmatpush1.xpose.msra.mxu0 0.0
        %2033 = vmatprep.mubr.f32.mxu0 0.0
        %2034 = vmatmul.mubr.f32.gmra.mrb[0].mxu0 %v1964
        %v2035 = vpop.f32.mrb[0].mxu0
        %v2036 = vadd.f32 0.0, %v2035
        %v2037 = vpop.f32.mrb[0].mxu0
        %2038 = vmatprep.mubr.f32.mxu0 0.0
        %2039 = vmatmul.mubr.f32.gmra.mrb[0].mxu0 %v1967
        %v2040 = vpop.f32.mrb[0].mxu0
        %v2041 = vadd.f32 0.0, %v2040
        %v2042 = vpop.f32.mrb[0].mxu0
        %2043 = vdwg.mxu0
        %v2045 = vsel %vm693, %v1469, 0
        %v2048 = vsel %vm693, %v1474, 0
        %2050 = vmatprep.subr.mxu0 0.0
        %2051 = vmatpush1.xpose.msra.mxu0 %v1397
        %2052 = vmatprep.subr.mxu0 0.0
        %2053 = vmatpush1.xpose.msra.mxu0 %v1400
        %2054 = vmatprep.subr.mxu0 0.0
        %2055 = vmatpush1.xpose.msra.mxu0 0.0
        %2056 = vmatprep.subr.mxu0 0.0
        %2057 = vmatpush1.xpose.msra.mxu0 0.0
        %2058 = vmatprep.subr.mxu0 0.0
        %2059 = vmatpush1.xpose.msra.mxu0 0.0
        %2060 = vmatprep.subr.mxu0 0.0
        %2061 = vmatpush1.xpose.msra.mxu0 0.0
        %2062 = vmatprep.subr.mxu0 0.0
        %2063 = vmatpush1.xpose.msra.mxu0 0.0
        %2064 = vmatprep.subr.mxu0 0.0
        %2065 = vmatpush1.xpose.msra.mxu0 0.0
        %2066 = vmatprep.subr.mxu0 0.0
        %2067 = vmatpush1.xpose.msra.mxu0 0.0
        %2068 = vmatprep.subr.mxu0 0.0
        %2069 = vmatpush1.xpose.msra.mxu0 0.0
        %2070 = vmatprep.subr.mxu0 0.0
        %2071 = vmatpush1.xpose.msra.mxu0 0.0
        %2072 = vmatprep.subr.mxu0 0.0
        %2073 = vmatpush1.xpose.msra.mxu0 0.0
        %2074 = vmatprep.subr.mxu0 0.0
        %2075 = vmatpush1.xpose.msra.mxu0 0.0
        %2076 = vmatprep.subr.mxu0 0.0
        %2077 = vmatpush1.xpose.msra.mxu0 0.0
        %2078 = vmatprep.subr.mxu0 0.0
        %2079 = vmatpush1.xpose.msra.mxu0 0.0
        %2080 = vmatprep.subr.mxu0 0.0
        %2081 = vmatpush1.xpose.msra.mxu0 0.0
        %2082 = vmatprep.subr.mxu0 0.0
        %2083 = vmatpush1.xpose.msra.mxu0 0.0
        %2084 = vmatprep.subr.mxu0 0.0
        %2085 = vmatpush1.xpose.msra.mxu0 0.0
        %2086 = vmatprep.subr.mxu0 0.0
        %2087 = vmatpush1.xpose.msra.mxu0 0.0
        %2088 = vmatprep.subr.mxu0 0.0
        %2089 = vmatpush1.xpose.msra.mxu0 0.0
        %2090 = vmatprep.subr.mxu0 0.0
        %2091 = vmatpush1.xpose.msra.mxu0 0.0
        %2092 = vmatprep.subr.mxu0 0.0
        %2093 = vmatpush1.xpose.msra.mxu0 0.0
        %2094 = vmatprep.subr.mxu0 0.0
        %2095 = vmatpush1.xpose.msra.mxu0 0.0
        %2096 = vmatprep.subr.mxu0 0.0
        %2097 = vmatpush1.xpose.msra.mxu0 0.0
        %2098 = vmatprep.subr.mxu0 0.0
        %2099 = vmatpush1.xpose.msra.mxu0 0.0
        %2100 = vmatprep.subr.mxu0 0.0
        %2101 = vmatpush1.xpose.msra.mxu0 0.0
        %2102 = vmatprep.subr.mxu0 0.0
        %2103 = vmatpush1.xpose.msra.mxu0 0.0
        %2104 = vmatprep.subr.mxu0 0.0
        %2105 = vmatpush1.xpose.msra.mxu0 0.0
        %2106 = vmatprep.subr.mxu0 0.0
        %2107 = vmatpush1.xpose.msra.mxu0 0.0
        %2108 = vmatprep.subr.mxu0 0.0
        %2109 = vmatpush1.xpose.msra.mxu0 0.0
        %2110 = vmatprep.subr.mxu0 0.0
        %2111 = vmatpush1.xpose.msra.mxu0 0.0
        %2112 = vmatprep.subr.mxu0 0.0
        %2113 = vmatpush1.xpose.msra.mxu0 0.0
        %2114 = vmatprep.mubr.f32.mxu0 0.0
        %2115 = vmatmul.mubr.f32.gmra.mrb[0].mxu0 %v2045
        %v2116 = vpop.f32.mrb[0].mxu0
        %v2117 = vadd.f32 0.0, %v2116
        %v2118 = vpop.f32.mrb[0].mxu0
        %2119 = vmatprep.mubr.f32.mxu0 0.0
        %2120 = vmatmul.mubr.f32.gmra.mrb[0].mxu0 %v2048
        %v2121 = vpop.f32.mrb[0].mxu0
        %v2122 = vadd.f32 0.0, %v2121
        %v2123 = vpop.f32.mrb[0].mxu0
        %2124 = vdwg.mxu0
        %v2126 = vsel %vm693, %v1550, 0
        %v2129 = vsel %vm693, %v1555, 0
        %2131 = vmatprep.subr.mxu0 0.0
        %2132 = vmatpush1.xpose.msra.mxu0 %v1478
        %2133 = vmatprep.subr.mxu0 0.0
        %2134 = vmatpush1.xpose.msra.mxu0 %v1481
        %2135 = vmatprep.subr.mxu0 0.0
        %2136 = vmatpush1.xpose.msra.mxu0 0.0
        %2137 = vmatprep.subr.mxu0 0.0
        %2138 = vmatpush1.xpose.msra.mxu0 0.0
        %2139 = vmatprep.subr.mxu0 0.0
        %2140 = vmatpush1.xpose.msra.mxu0 0.0
        %2141 = vmatprep.subr.mxu0 0.0
        %2142 = vmatpush1.xpose.msra.mxu0 0.0
        %2143 = vmatprep.subr.mxu0 0.0
        %2144 = vmatpush1.xpose.msra.mxu0 0.0
        %2145 = vmatprep.subr.mxu0 0.0
        %2146 = vmatpush1.xpose.msra.mxu0 0.0
        %2147 = vmatprep.subr.mxu0 0.0
        %2148 = vmatpush1.xpose.msra.mxu0 0.0
        %2149 = vmatprep.subr.mxu0 0.0
        %2150 = vmatpush1.xpose.msra.mxu0 0.0
        %2151 = vmatprep.subr.mxu0 0.0
        %2152 = vmatpush1.xpose.msra.mxu0 0.0
        %2153 = vmatprep.subr.mxu0 0.0
        %2154 = vmatpush1.xpose.msra.mxu0 0.0
        %2155 = vmatprep.subr.mxu0 0.0
        %2156 = vmatpush1.xpose.msra.mxu0 0.0
        %2157 = vmatprep.subr.mxu0 0.0
        %2158 = vmatpush1.xpose.msra.mxu0 0.0
        %2159 = vmatprep.subr.mxu0 0.0
        %2160 = vmatpush1.xpose.msra.mxu0 0.0
        %2161 = vmatprep.subr.mxu0 0.0
        %2162 = vmatpush1.xpose.msra.mxu0 0.0
        %2163 = vmatprep.subr.mxu0 0.0
        %2164 = vmatpush1.xpose.msra.mxu0 0.0
        %2165 = vmatprep.subr.mxu0 0.0
        %2166 = vmatpush1.xpose.msra.mxu0 0.0
        %2167 = vmatprep.subr.mxu0 0.0
        %2168 = vmatpush1.xpose.msra.mxu0 0.0
        %2169 = vmatprep.subr.mxu0 0.0
        %2170 = vmatpush1.xpose.msra.mxu0 0.0
        %2171 = vmatprep.subr.mxu0 0.0
        %2172 = vmatpush1.xpose.msra.mxu0 0.0
        %2173 = vmatprep.subr.mxu0 0.0
        %2174 = vmatpush1.xpose.msra.mxu0 0.0
        %2175 = vmatprep.subr.mxu0 0.0
        %2176 = vmatpush1.xpose.msra.mxu0 0.0
        %2177 = vmatprep.subr.mxu0 0.0
        %2178 = vmatpush1.xpose.msra.mxu0 0.0
        %2179 = vmatprep.subr.mxu0 0.0
        %2180 = vmatpush1.xpose.msra.mxu0 0.0
        %2181 = vmatprep.subr.mxu0 0.0
        %2182 = vmatpush1.xpose.msra.mxu0 0.0
        %2183 = vmatprep.subr.mxu0 0.0
        %2184 = vmatpush1.xpose.msra.mxu0 0.0
        %2185 = vmatprep.subr.mxu0 0.0
        %2186 = vmatpush1.xpose.msra.mxu0 0.0
        %2187 = vmatprep.subr.mxu0 0.0
        %2188 = vmatpush1.xpose.msra.mxu0 0.0
        %2189 = vmatprep.subr.mxu0 0.0
        %2190 = vmatpush1.xpose.msra.mxu0 0.0
        %2191 = vmatprep.subr.mxu0 0.0
        %2192 = vmatpush1.xpose.msra.mxu0 0.0
        %2193 = vmatprep.subr.mxu0 0.0
        %2194 = vmatpush1.xpose.msra.mxu0 0.0
        %2195 = vmatprep.mubr.f32.mxu0 0.0
        %2196 = vmatmul.mubr.f32.gmra.mrb[0].mxu0 %v2126
        %v2197 = vpop.f32.mrb[0].mxu0
        %v2198 = vadd.f32 0.0, %v2197
        %v2199 = vpop.f32.mrb[0].mxu0
        %2200 = vmatprep.mubr.f32.mxu0 0.0
        %2201 = vmatmul.mubr.f32.gmra.mrb[0].mxu0 %v2129
        %v2202 = vpop.f32.mrb[0].mxu0
        %v2203 = vadd.f32 0.0, %v2202
        %v2204 = vpop.f32.mrb[0].mxu0
        %2205 = vdwg.mxu0
        %v2207 = vsel %vm693, %v1631, 0
        %v2210 = vsel %vm693, %v1636, 0
        %2212 = vmatprep.subr.mxu0 0.0
        %2213 = vmatpush1.xpose.msra.mxu0 %v1559
        %2214 = vmatprep.subr.mxu0 0.0
        %2215 = vmatpush1.xpose.msra.mxu0 %v1562
        %2216 = vmatprep.subr.mxu0 0.0
        %2217 = vmatpush1.xpose.msra.mxu0 0.0
        %2218 = vmatprep.subr.mxu0 0.0
        %2219 = vmatpush1.xpose.msra.mxu0 0.0
        %2220 = vmatprep.subr.mxu0 0.0
        %2221 = vmatpush1.xpose.msra.mxu0 0.0
        %2222 = vmatprep.subr.mxu0 0.0
        %2223 = vmatpush1.xpose.msra.mxu0 0.0
        %2224 = vmatprep.subr.mxu0 0.0
        %2225 = vmatpush1.xpose.msra.mxu0 0.0
        %2226 = vmatprep.subr.mxu0 0.0
        %2227 = vmatpush1.xpose.msra.mxu0 0.0
        %2228 = vmatprep.subr.mxu0 0.0
        %2229 = vmatpush1.xpose.msra.mxu0 0.0
        %2230 = vmatprep.subr.mxu0 0.0
        %2231 = vmatpush1.xpose.msra.mxu0 0.0
        %2232 = vmatprep.subr.mxu0 0.0
        %2233 = vmatpush1.xpose.msra.mxu0 0.0
        %2234 = vmatprep.subr.mxu0 0.0
        %2235 = vmatpush1.xpose.msra.mxu0 0.0
        %2236 = vmatprep.subr.mxu0 0.0
        %2237 = vmatpush1.xpose.msra.mxu0 0.0
        %2238 = vmatprep.subr.mxu0 0.0
        %2239 = vmatpush1.xpose.msra.mxu0 0.0
        %2240 = vmatprep.subr.mxu0 0.0
        %2241 = vmatpush1.xpose.msra.mxu0 0.0
        %2242 = vmatprep.subr.mxu0 0.0
        %2243 = vmatpush1.xpose.msra.mxu0 0.0
        %2244 = vmatprep.subr.mxu0 0.0
        %2245 = vmatpush1.xpose.msra.mxu0 0.0
        %2246 = vmatprep.subr.mxu0 0.0
        %2247 = vmatpush1.xpose.msra.mxu0 0.0
        %2248 = vmatprep.subr.mxu0 0.0
        %2249 = vmatpush1.xpose.msra.mxu0 0.0
        %2250 = vmatprep.subr.mxu0 0.0
        %2251 = vmatpush1.xpose.msra.mxu0 0.0
        %2252 = vmatprep.subr.mxu0 0.0
        %2253 = vmatpush1.xpose.msra.mxu0 0.0
        %2254 = vmatprep.subr.mxu0 0.0
        %2255 = vmatpush1.xpose.msra.mxu0 0.0
        %2256 = vmatprep.subr.mxu0 0.0
        %2257 = vmatpush1.xpose.msra.mxu0 0.0
        %2258 = vmatprep.subr.mxu0 0.0
        %2259 = vmatpush1.xpose.msra.mxu0 0.0
        %2260 = vmatprep.subr.mxu0 0.0
        %2261 = vmatpush1.xpose.msra.mxu0 0.0
        %2262 = vmatprep.subr.mxu0 0.0
        %2263 = vmatpush1.xpose.msra.mxu0 0.0
        %2264 = vmatprep.subr.mxu0 0.0
        %2265 = vmatpush1.xpose.msra.mxu0 0.0
        %2266 = vmatprep.subr.mxu0 0.0
        %2267 = vmatpush1.xpose.msra.mxu0 0.0
        %2268 = vmatprep.subr.mxu0 0.0
        %2269 = vmatpush1.xpose.msra.mxu0 0.0
        %2270 = vmatprep.subr.mxu0 0.0
        %2271 = vmatpush1.xpose.msra.mxu0 0.0
        %2272 = vmatprep.subr.mxu0 0.0
        %2273 = vmatpush1.xpose.msra.mxu0 0.0
        %2274 = vmatprep.subr.mxu0 0.0
        %2275 = vmatpush1.xpose.msra.mxu0 0.0
        %2276 = vmatprep.mubr.f32.mxu0 0.0
        %2277 = vmatmul.mubr.f32.gmra.mrb[0].mxu0 %v2207
        %v2278 = vpop.f32.mrb[0].mxu0
        %v2279 = vadd.f32 0.0, %v2278
        %v2280 = vpop.f32.mrb[0].mxu0
        %2281 = vmatprep.mubr.f32.mxu0 0.0
        %2282 = vmatmul.mubr.f32.gmra.mrb[0].mxu0 %v2210
        %v2283 = vpop.f32.mrb[0].mxu0
        %v2284 = vadd.f32 0.0, %v2283
        %v2285 = vpop.f32.mrb[0].mxu0
        %2286 = vdwg.mxu0
        %2289 = vrot.lane.b32.xlu0 %v1793, 16
        %v2290 = vpop.permute.xlu0 %2289
        %2291 = vrot.lane.b32.xlu0 %v1798, 16
        %v2292 = vpop.permute.xlu0 %2291
        %2297 = vrot.lane.b32.xlu0 %v1874, 32
        %v2298 = vpop.permute.xlu0 %2297
        %2299 = vrot.lane.b32.xlu0 %v1879, 32
        %v2300 = vpop.permute.xlu0 %2299
        %2305 = vrot.lane.b32.xlu0 %v1955, 48
        %v2306 = vpop.permute.xlu0 %2305
        %2307 = vrot.lane.b32.xlu0 %v1960, 48
        %v2308 = vpop.permute.xlu0 %2307
        %2313 = vrot.lane.b32.xlu0 %v2036, 64
        %v2314 = vpop.permute.xlu0 %2313
        %2315 = vrot.lane.b32.xlu0 %v2041, 64
        %v2316 = vpop.permute.xlu0 %2315
        %2321 = vrot.lane.b32.xlu0 %v2117, 80
        %v2322 = vpop.permute.xlu0 %2321
        %2323 = vrot.lane.b32.xlu0 %v2122, 80
        %v2324 = vpop.permute.xlu0 %2323
        %2329 = vrot.lane.b32.xlu0 %v2198, 96
        %v2330 = vpop.permute.xlu0 %2329
        %2331 = vrot.lane.b32.xlu0 %v2203, 96
        %v2332 = vpop.permute.xlu0 %2331
        %2337 = vrot.lane.b32.xlu0 %v2279, 112
        %v2338 = vpop.permute.xlu0 %2337
        %2339 = vrot.lane.b32.xlu0 %v2284, 112
        %v2340 = vpop.permute.xlu0 %2339
        %v2343 = vsel %vm693, %v1712, %v2290
        %v2344 = vsel %vm693, %v1717, %v2292
        %vm2345 = vcmask 261120
        %v2346 = vsel %vm2345, %v2343, %v2298
        %v2347 = vsel %vm2345, %v2344, %v2300
        %vm2348 = vcmask 392192
        %v2349 = vsel %vm2348, %v2346, %v2306
        %v2350 = vsel %vm2348, %v2347, %v2308
        %vm2351 = vcmask 523264
        %v2352 = vsel %vm2351, %v2349, %v2314
        %v2353 = vsel %vm2351, %v2350, %v2316
        %vm2354 = vcmask 654336
        %v2355 = vsel %vm2354, %v2352, %v2322
        %v2356 = vsel %vm2354, %v2353, %v2324
        %vm2357 = vcmask 785408
        %v2358 = vsel %vm2357, %v2355, %v2330
        %v2359 = vsel %vm2357, %v2356, %v2332
        %vm2360 = vcmask 916480
        %v2361 = vsel %vm2360, %v2358, %v2338
        %v2362 = vsel %vm2360, %v2359, %v2340
        %v2363 = vld [vmem:[%s251] sm:$0xff]
        %v2364 = vld [vmem:[%s251 + $0x8] sm:$0xff]
        %v2365 = vlog2.pop %v2363
        %v2366 = vmul.f32 %v2365, 0.6931472
        %v2367 = vlog2.pop %v2364
        %v2368 = vmul.f32 %v2367, 0.6931472
        %v2369 = vsub.f32 0.0, %v2366
        %v2370 = vsub.f32 0.0, %v2368
        %v2371 = vlog2.pop %v2369
        %v2372 = vmul.f32 %v2371, 0.6931472
        %v2373 = vlog2.pop %v2370
        %v2374 = vmul.f32 %v2373, 0.6931472
        %v2375 = vsub.f32 0.0, %v2372
        %v2376 = vsub.f32 0.0, %v2374
        %v2377 = vld [vmem:[%s260] sm:$0xff]
        %v2378 = vld [vmem:[%s260 + $0x8] sm:$0xff]
        %v2379 = vlog2.pop %v2377
        %v2380 = vmul.f32 %v2379, 0.6931472
        %v2381 = vlog2.pop %v2378
        %v2382 = vmul.f32 %v2381, 0.6931472
        %v2383 = vsub.f32 0.0, %v2380
        %v2384 = vsub.f32 0.0, %v2382
        %v2385 = vlog2.pop %v2383
        %v2386 = vmul.f32 %v2385, 0.6931472
        %v2387 = vlog2.pop %v2384
        %v2388 = vmul.f32 %v2387, 0.6931472
        %v2389 = vsub.f32 0.0, %v2386
        %v2390 = vsub.f32 0.0, %v2388
        %v2391 = vsub.f32 %v2389, %v2375
        %v2392 = vsub.f32 %v2390, %v2376
        %v2393 = vld [vmem:[%s2] sm:$0xff]
        %v2394 = vld [vmem:[%s2 + $0x8] sm:$0xff]
        %v2395 = vmul.f32 %v2393, 2.0
        %v2396 = vmul.f32 %v2394, 2.0
        %v2397 = vsub.f32 %v2391, %v2395
        %v2398 = vsub.f32 %v2392, %v2396
        %v2399 = vxor.u32 %v2397, 2147483648
        %v2400 = vxor.u32 %v2398, 2147483648
        %v2401 = vmul.f32 %v2399, 1.442695
        %v2402 = vpow.pop %v2401
        %v2403 = vmul.f32 %v2400, 1.442695
        %v2404 = vpow.pop %v2403
        %v2405 = vadd.f32 %v2402, 1.0
        %v2406 = vadd.f32 %v2404, 1.0
        %v2407 = vrcp.pop %v2405
        %v2408 = vmul.f32 1.0, %v2407
        %v2409 = vrcp.pop %v2406
        %v2410 = vmul.f32 1.0, %v2409
        %v2411 = vmul.f32 %v2408, %v2361
        %v2412 = vmul.f32 %v2410, %v2362
        %2413 = vst [vmem:[%s295] sm:$0xff] %v2411
        %2414 = vst [vmem:[%s295 + $0x8] sm:$0xff] %v2412
        %s2415 = sand.u32 %s153, 1
        %s2416 = scalar_lea.sflag [#allocation4], %s2415
        %s2417 = sand.u32 %s153, 1
        %s2418 = smul.addr %s2417, 16
        %s2419 = scalar_lea.vmem [#allocation7], %s2418
        // Predicated region
        $region49: #{tpu_custom_call.1} parent=39 // pred_check
          %p2420 = pneg %p163
        $region50: #{tpu_custom_call.1} parent=39 // pred_check_branch
          %2422 = sbr.rel (%p2420) target = $region52
        $region51: #{tpu_custom_call.1} parent=39 // pred_region
          %s2424 = ssub.s32 256, 256
          %2425 = vsyncadd %s2416, %s2424
          %s2426 = smul.addr %s25, 2
          %s2427 = smul.addr %s2426, 128
          %s2428 = scalar_lea.hbm %s5, %s2427
          %s2429 = sshll.u32 %s2419, 4
          %s2430 = int_to_ptr.vmem [resolvable:$true] %s2429
          %2435 = dma.vmem_to_hbm [thread:$0]  %s2430, 256, %s2428, %s2416, 128, 128, 8
        $region52: #{tpu_custom_call.1} parent=39 // pred_fallthru
          _
      $region40: #{tpu_custom_call.1} parent=5 // pred_fallthru
        _
      %p2436 = scmp.le.s32.totalorder 2, %s20
      // Predicated region
      $region53: #{tpu_custom_call.1} parent=5 // pred_check
        %p2437 = pneg %p2436
      $region54: #{tpu_custom_call.1} parent=5 // pred_check_branch
        %2439 = sbr.rel (%p2437) target = $region56
      $region55: #{tpu_custom_call.1} parent=5 // pred_region
        %s2440 = ssub.s32 %s20, 2
        // Predicated region
        $region57: #{tpu_custom_call.1} parent=55 // pred_check
          %p2441 = pneg %p169
        $region58: #{tpu_custom_call.1} parent=55 // pred_check_branch
          %2443 = sbr.rel (%p2441) target = $region60
        $region59: #{tpu_custom_call.1} parent=55 // pred_region
          %s2444 = sand.u32 %s154, 1
          %s2445 = scalar_lea.sflag [#allocation4], %s2444
          %s2446 = sand.u32 %s154, 1
          %s2447 = smul.addr %s2446, 16
          %s2448 = scalar_lea.vmem [#allocation7], %s2447
          %2449 = dma.done %s2445, 256
        $region60: #{tpu_custom_call.1} parent=55 // pred_fallthru
          _
      $region56: #{tpu_custom_call.1} parent=5 // pred_fallthru
        _
    $region6: #{tpu_custom_call.1} parent=1 // loop_footer
      %s24 = sadd.s32 1, %s20
    $region7: #{tpu_custom_call.1} parent=1 // loop_footer_branch
      %19 = sbr.rel target = $region3
    $region8: #{tpu_custom_call.1} parent=1 // loop_exit
      _
    %2450 = vsyncpa [#allocation3], 1
    %s2451 = scalar_lea.sflag [#allocation3], 1
    %2452 = vsyncpa %s2451, 1
    %2453 = vsyncpa [#allocation6], 1
    %s2454 = scalar_lea.sflag [#allocation6], 1
    %2455 = vsyncpa %s2454, 1
    %2456 = vsyncpa [#allocation4], 1
    %s2457 = scalar_lea.sflag [#allocation4], 1
    %2458 = vsyncpa %s2457, 1

</llo_original>
